<compile_context>
chip_gen: v7x
topology: tpu7x:2x2x1
jax: 0.10.0
libtpu: 0.0.40
codegen_flags: <defaults>
</compile_context>

<pallas_src>
import functools
import math

import jax
import jax.numpy as jnp
from jax.experimental import pallas as pl
from jax.experimental.pallas import tpu as pltpu


def fusion_heads_kernel(
    a_hidden_ref, a_mask_ref, inv_den_ref, t_feat_ref, text_cls_ref,
    audio_cls_ref,
    w_q_ref, b_q_ref, w_kv_ref, b_kv_ref, wo_ref, bo_ref, w1_ref, b1_ref,
    wT_ref, wA_ref, w2_ref, head_reduce_ref, head_expand_ref, b_sm_ref,
    out_ref, a_sum_ref, *, nheads):
    f32 = jnp.float32
    tb, D = t_feat_ref.shape
    hd = D // nheads
    w_dtype = w_kv_ref.dtype
    s_idx = pl.program_id(1)

    # ---- masked sum over this S tile (f32 accumulation in VMEM scratch) -----
    @pl.when(s_idx == 0)
    def _():
        a_sum_ref[...] = jnp.zeros_like(a_sum_ref)

    ah = a_hidden_ref[...]                                    # [tb, ts, D] bf16
    am = a_mask_ref[...]                                      # [tb, ts]
    prod = ah * am.astype(ah.dtype)[:, :, None]               # mask-mul in stream dtype
    a_sum_ref[...] += jnp.sum(prod, axis=1, dtype=f32)        # f32 accumulation

    # ---- attention / MLP tail only once, on the last S step ------------------
    @pl.when(s_idx == pl.num_programs(1) - 1)
    def _():
        a_feat = a_sum_ref[...] * inv_den_ref[...]            # [tb, D]
        t_feat = t_feat_ref[...].astype(f32)                  # [tb, D]

        # unimodal D->1 heads as lane reductions (no N=1 matmuls)
        bT = b_sm_ref[0]
        bA = b_sm_ref[1]
        b2 = b_sm_ref[2]
        t_out = jnp.sum(t_feat * wT_ref[...], axis=-1, keepdims=True) + bT
        a_out = jnp.sum(a_feat * wA_ref[...], axis=-1, keepdims=True) + bA

        # MultiHeadAttentionFusion over the 2 CLS tokens
        tc = text_cls_ref[...].astype(f32)                    # [tb, D]
        ac = audio_cls_ref[...].astype(f32)                   # [tb, D]
        context = 0.5 * (tc + ac)                             # mean over 2 tokens

        # q = context @ wq ; kv = [tc; ac] @ [wk|wv]   (no wasted MACs)
        q = (jnp.dot(context.astype(w_dtype), w_q_ref[...],
                     preferred_element_type=f32) + b_q_ref[...])          # [tb, D]
        x_kv = jnp.concatenate([tc, ac], axis=0).astype(w_dtype)          # [2tb, D]
        kv = (jnp.dot(x_kv, w_kv_ref[...], preferred_element_type=f32)
              + b_kv_ref[...])                                            # [2tb, 2D]
        k_t = kv[0:tb, 0:D]
        k_a = kv[tb:2 * tb, 0:D]
        v_t = kv[0:tb, D:2 * D]
        v_a = kv[tb:2 * tb, D:2 * D]

        # per-head scores via lane-dense one-hot reduce (hoisted matrices)
        scale = 1.0 / math.sqrt(hd)
        qk = jnp.concatenate([q * k_t, q * k_a], axis=0)                  # [2tb, D]
        scores = jnp.dot(qk, head_reduce_ref[...],
                         preferred_element_type=f32) * scale              # [2tb, H]
        s_t, s_a = scores[:tb], scores[tb:]
        mx = jnp.maximum(s_t, s_a)
        e_t = jnp.exp(s_t - mx)
        e_a = jnp.exp(s_a - mx)
        inv_den = pl.reciprocal(e_t + e_a, approx=True)
        wts = jnp.concatenate([e_t * inv_den, e_a * inv_den], axis=0)     # [2tb, H]
        wts_full = jnp.dot(wts, head_expand_ref[...],
                           preferred_element_type=f32)                    # [2tb, D]
        attn = wts_full[:tb] * v_t + wts_full[tb:] * v_a                  # [tb, D]

        # output projection + residual
        attn_p = (jnp.dot(attn.astype(w_dtype), wo_ref[...],
                          preferred_element_type=f32) + bo_ref[...])
        fused = attn_p + context                                          # [tb, D]

        # fused_output_layers: Linear(D,512) -> ReLU -> (512->1 lane reduce)
        h1 = jnp.maximum(
            jnp.dot(fused.astype(w_dtype), w1_ref[...],
                    preferred_element_type=f32) + b1_ref[...], 0.0)       # [tb, hid]
        m_out = jnp.sum(h1 * w2_ref[...], axis=-1, keepdims=True) + b2    # [tb, 1]

        # pack T/A/M into one lane-dense [tb, 128] store
        lanes = out_ref.shape[1]
        lane = jax.lax.broadcasted_iota(jnp.int32, (tb, lanes), 1)
        out_ref[...] = (jnp.where(lane == 0, t_out, 0.0)
                        + jnp.where(lane == 1, a_out, 0.0)
                        + jnp.where(lane == 2, m_out, 0.0))


def _pick_batch_tile(B, cap=256):
    if B <= cap or B % 8 != 0:
        return B
    t = cap - (cap % 8)
    while t >= 8:
        if B % t == 0:
            return t
        t -= 8
    return B


def _pick_seq_tile(S, cap=512):
    if S <= cap:
        return S
    t = cap - (cap % 128)
    while t >= 128:
        if S % t == 0:
            return t
        t -= 128
    return S


def baseline_heads(a_hidden, a_mask, t_feat, text_cls, audio_cls, params, *,
                   nheads, weights_dtype=jnp.bfloat16,
                   stream_dtype=jnp.bfloat16):
    B, S, D = a_hidden.shape
    hid = params["w1"].shape[1]

    tb = _pick_batch_tile(B)
    ts = _pick_seq_tile(S)
    nb, ns = B // tb, S // ts

    # ---- weight / constant preprocessing (wrapper side, done once) -----------
    w_q = params["wq"].astype(weights_dtype)                               # [D, D]
    b_q = params["bq"].reshape(1, D).astype(jnp.float32)
    w_kv = jnp.concatenate([params["wk"], params["wv"]],
                           axis=1).astype(weights_dtype)                   # [D, 2D]
    b_kv = jnp.concatenate([params["bk"].reshape(1, D),
                            params["bv"].reshape(1, D)],
                           axis=1).astype(jnp.float32)                     # [1, 2D]
    wo = params["wo"].astype(weights_dtype)
    bo = params["bo"].reshape(1, D).astype(jnp.float32)
    w1 = params["w1"].astype(weights_dtype)
    b1 = params["b1"].reshape(1, hid).astype(jnp.float32)
    wT_row = params["wT"].reshape(1, D).astype(jnp.float32)
    wA_row = params["wA"].reshape(1, D).astype(jnp.float32)
    w2_row = params["w2"].reshape(1, hid).astype(jnp.float32)
    b_scalars = jnp.concatenate(
        [params["bT"].reshape(-1), params["bA"].reshape(-1),
         params["b2"].reshape(-1)]).astype(jnp.float32)                    # [3] -> SMEM

    # head one-hot reduce/expand maps, hoisted out of the kernel
    hd = D // nheads
    d_idx = jnp.arange(D)[:, None]
    h_idx = jnp.arange(nheads)[None, :]
    head_reduce = (d_idx // hd == h_idx).astype(jnp.float32)               # [D, H]
    head_expand = head_reduce.T                                            # [H, D]

    # masked-mean denominators precomputed here (removes in-kernel reduce);
    # max(.,1) deliberately guards all-zero mask rows.
    inv_den = 1.0 / jnp.maximum(
        jnp.sum(a_mask.astype(jnp.float32), axis=1, keepdims=True), 1.0)   # [B, 1]

    # stream the HBM-bound input in bf16 (accumulation stays f32 in-kernel)
    a_hidden_s = a_hidden.astype(stream_dtype)
    a_mask_s = a_mask.astype(stream_dtype)

    # ---- VMEM budget (tile footprint + headroom) ------------------------------
    isz_s = jnp.dtype(stream_dtype).itemsize
    isz_w = jnp.dtype(weights_dtype).itemsize
    stream_bytes = 2 * (tb * ts * D + tb * ts) * isz_s           # double-buffered
    batched_bytes = 2 * (3 * tb * D + tb) * 4
    weight_bytes = ((D * D + 2 * D * D + D * D + D * hid) * isz_w
                    + (D + 2 * D + D + hid + 3 * D + 2 * hid
                       + 2 * nheads * D) * 4)
    scratch_bytes = tb * D * 4
    out_bytes = 2 * tb * 128 * 4
    vmem_bytes = int(1.5 * (stream_bytes + batched_bytes + 2 * weight_bytes
                            + scratch_bytes + out_bytes))
    vmem_bytes = max(8 << 20, min(vmem_bytes, 64 << 20))

    batched2 = lambda: pl.BlockSpec((tb, D), lambda i, s: (i, 0))

    def make_specs(single_buffer_weights):
        def resident(shape):
            if single_buffer_weights:
                return pl.BlockSpec(shape, lambda i, s: (0,) * len(shape),
                                    pipeline_mode=pl.Buffered(1))
            return pl.BlockSpec(shape, lambda i, s: (0,) * len(shape))
        return [
            pl.BlockSpec((tb, ts, D), lambda i, s: (i, s, 0)),   # a_hidden (bf16)
            pl.BlockSpec((tb, ts), lambda i, s: (i, s)),         # a_mask (bf16)
            pl.BlockSpec((tb, 1), lambda i, s: (i, 0)),          # inv_den
            batched2(),                                          # t_feat
            batched2(),                                          # text_cls
            batched2(),                                          # audio_cls
            resident((D, D)),                                    # w_q (bf16)
            resident((1, D)),                                    # b_q
            resident((D, 2 * D)),                                # w_kv (bf16)
            resident((1, 2 * D)),                                # b_kv
            resident((D, D)),                                    # wo (bf16)
            resident((1, D)),                                    # bo
            resident((D, hid)),                                  # w1 (bf16)
            resident((1, hid)),                                  # b1
            resident((1, D)),                                    # wT row
            resident((1, D)),                                    # wA row
            resident((1, hid)),                                  # w2 row
            resident((D, nheads)),                               # head_reduce
            resident((nheads, D)),                               # head_expand
            pl.BlockSpec(memory_space=pltpu.MemorySpace.SMEM),   # [bT, bA, b2]
        ]

    def run(in_specs):
        out = pl.pallas_call(
            functools.partial(fusion_heads_kernel, nheads=nheads),
            out_shape=jax.ShapeDtypeStruct((B, 128), jnp.float32),
            grid=(nb, ns),
            in_specs=in_specs,
            out_specs=pl.BlockSpec((tb, 128), lambda i, s: (i, 0)),
            scratch_shapes=[pltpu.VMEM((tb, D), jnp.float32)],
            compiler_params=pltpu.CompilerParams(
                dimension_semantics=("parallel", "arbitrary"),
                vmem_limit_bytes=vmem_bytes),
        )(a_hidden_s, a_mask_s, inv_den, t_feat, text_cls, audio_cls,
          w_q, b_q, w_kv, b_kv, wo, bo, w1, b1, wT_row, wA_row, w2_row,
          head_reduce, head_expand, b_scalars)
        return jax.block_until_ready(out)

    try:
        packed = run(make_specs(single_buffer_weights=True))
    except Exception:
        # pl.Buffered(1) not supported on this jax build -> default buffering.
        packed = run(make_specs(single_buffer_weights=False))

    return packed[:, 0:1], packed[:, 1:2], packed[:, 2:3]


def reference(a_hidden, a_mask, t_feat, text_cls, audio_cls, params, *, nheads):
    """Pure-JAX f32 reference mirroring the PyTorch semantics."""
    denom = jnp.sum(a_mask, axis=1, keepdims=True)
    a_feat = jnp.sum(a_hidden * a_mask[:, :, None], axis=1) / denom
    t_out = t_feat @ params["wT"] + params["bT"]
    a_out = a_feat @ params["wA"] + params["bA"]

    context = 0.5 * (text_cls + audio_cls)
    q = context @ params["wq"] + params["bq"]
    k = jnp.stack([text_cls @ params["wk"] + params["bk"],
                   audio_cls @ params["wk"] + params["bk"]], axis=1)   # [B,2,D]
    v = jnp.stack([text_cls @ params["wv"] + params["bv"],
                   audio_cls @ params["wv"] + params["bv"]], axis=1)
    B, D = q.shape
    hd = D // nheads
    qh = q.reshape(B, nheads, hd)
    kh = k.reshape(B, 2, nheads, hd)
    vh = v.reshape(B, 2, nheads, hd)
    s = jnp.einsum("bhd,bkhd->bhk", qh, kh) / jnp.sqrt(hd)
    p = jax.nn.softmax(s, axis=-1)
    o = jnp.einsum("bhk,bkhd->bhd", p, vh).reshape(B, D)
    fused = o @ params["wo"] + params["bo"] + context
    h1 = jnp.maximum(fused @ params["w1"] + params["b1"], 0.0)
    m_out = h1 @ params["w2"] + params["b2"]
    return t_out, a_out, m_out


def init_params(key, D, hid):
    ks = jax.random.split(key, 16)
    s = 0.05
    n = lambda k, shape: (s * jax.random.normal(k, shape)).astype(jnp.float32)
    return {
        "wT": n(ks[0], (D, 1)),    "bT": n(ks[1], (1, 1)),
        "wA": n(ks[2], (D, 1)),    "bA": n(ks[3], (1, 1)),
        "wq": n(ks[4], (D, D)),    "bq": n(ks[5], (1, D)),
        "wk": n(ks[6], (D, D)),    "bk": n(ks[7], (1, D)),
        "wv": n(ks[8], (D, D)),    "bv": n(ks[9], (1, D)),
        "wo": n(ks[10], (D, D)),   "bo": n(ks[11], (1, D)),
        "w1": n(ks[12], (D, hid)), "b1": n(ks[13], (1, hid)),
        "w2": n(ks[14], (hid, 1)), "b2": n(ks[15], (1, 1)),
    }


if __name__ == "__main__":
    B, S_A, D, NHEADS, HID = 2, 8, 32, 4, 512

    key = jax.random.PRNGKey(0)
    kx = jax.random.split(key, 6)
    a_hidden = jax.random.normal(kx[0], (B, S_A, D), jnp.float32)
    lens = jnp.array([6, 8], jnp.int32)                         # valid audio frames
    a_mask = (jnp.arange(S_A)[None, :] < lens[:, None]).astype(jnp.float32)
    t_feat = jax.random.normal(kx[1], (B, D), jnp.float32)      # roberta pooler
    text_cls = jax.random.normal(kx[2], (B, D), jnp.float32)    # post-CME text CLS
    audio_cls = jax.random.normal(kx[3], (B, D), jnp.float32)   # post-CME audio CLS
    params = init_params(kx[4], D, HID)

    outs = baseline_heads(a_hidden, a_mask, t_feat, text_cls, audio_cls,
                          params, nheads=NHEADS)
    jax.block_until_ready(outs)

    refs = reference(a_hidden, a_mask, t_feat, text_cls, audio_cls,
                     params, nheads=NHEADS)
    for name, o, r in zip(("T", "A", "M"), outs, refs):
        assert o.shape == (B, 1), (name, o.shape)
        assert jnp.allclose(o, r, atol=3e-2, rtol=2e-2), (name, o, r)

    print("KERNEL_OK")
</pallas_src>

<mosaic_0001>
module attributes {stable_mosaic.version = 11 : i64} {
  func.func @fusion_heads_kernel(%arg0: i32, %arg1: i32, %arg2: memref<2x8x32xbf16, #tpu.memory_space<vmem>>, %arg3: memref<2x8xbf16, #tpu.memory_space<vmem>>, %arg4: memref<2x1xf32, #tpu.memory_space<vmem>>, %arg5: memref<2x32xf32, #tpu.memory_space<vmem>>, %arg6: memref<2x32xf32, #tpu.memory_space<vmem>>, %arg7: memref<2x32xf32, #tpu.memory_space<vmem>>, %arg8: memref<32x32xbf16, #tpu.memory_space<vmem>>, %arg9: memref<1x32xf32, #tpu.memory_space<vmem>>, %arg10: memref<32x64xbf16, #tpu.memory_space<vmem>>, %arg11: memref<1x64xf32, #tpu.memory_space<vmem>>, %arg12: memref<32x32xbf16, #tpu.memory_space<vmem>>, %arg13: memref<1x32xf32, #tpu.memory_space<vmem>>, %arg14: memref<32x512xbf16, #tpu.memory_space<vmem>>, %arg15: memref<1x512xf32, #tpu.memory_space<vmem>>, %arg16: memref<1x32xf32, #tpu.memory_space<vmem>>, %arg17: memref<1x32xf32, #tpu.memory_space<vmem>>, %arg18: memref<1x512xf32, #tpu.memory_space<vmem>>, %arg19: memref<32x4xf32, #tpu.memory_space<vmem>>, %arg20: memref<4x32xf32, #tpu.memory_space<vmem>>, %arg21: memref<3xf32, #tpu.memory_space<smem>>, %arg22: memref<2x128xf32, #tpu.memory_space<vmem>>, %arg23: memref<2x32xf32, #tpu.memory_space<vmem>>) attributes {dimension_semantics = [#tpu.dimension_semantics<parallel>, #tpu.dimension_semantics<arbitrary>], iteration_bounds = array<i64: 1, 1>, scalar_prefetch = 0 : i64, scratch_operands = 1 : i64, tpu.core_type = #tpu.core_type<tc>, window_params = [{transform_indices = @transform_0, window_bounds = array<i64: 2, 8, 32>}, {transform_indices = @transform_1, window_bounds = array<i64: 2, 8>}, {transform_indices = @transform_2, window_bounds = array<i64: 2, 1>}, {transform_indices = @transform_3, window_bounds = array<i64: 2, 32>}, {transform_indices = @transform_4, window_bounds = array<i64: 2, 32>}, {transform_indices = @transform_5, window_bounds = array<i64: 2, 32>}, {pipeline_mode = #tpu.pipeline_mode<synchronous>, transform_indices = @transform_6, window_bounds = array<i64: 32, 32>}, {pipeline_mode = #tpu.pipeline_mode<synchronous>, transform_indices = @transform_7, window_bounds = array<i64: 1, 32>}, {pipeline_mode = #tpu.pipeline_mode<synchronous>, transform_indices = @transform_8, window_bounds = array<i64: 32, 64>}, {pipeline_mode = #tpu.pipeline_mode<synchronous>, transform_indices = @transform_9, window_bounds = array<i64: 1, 64>}, {pipeline_mode = #tpu.pipeline_mode<synchronous>, transform_indices = @transform_10, window_bounds = array<i64: 32, 32>}, {pipeline_mode = #tpu.pipeline_mode<synchronous>, transform_indices = @transform_11, window_bounds = array<i64: 1, 32>}, {pipeline_mode = #tpu.pipeline_mode<synchronous>, transform_indices = @transform_12, window_bounds = array<i64: 32, 512>}, {pipeline_mode = #tpu.pipeline_mode<synchronous>, transform_indices = @transform_13, window_bounds = array<i64: 1, 512>}, {pipeline_mode = #tpu.pipeline_mode<synchronous>, transform_indices = @transform_14, window_bounds = array<i64: 1, 32>}, {pipeline_mode = #tpu.pipeline_mode<synchronous>, transform_indices = @transform_15, window_bounds = array<i64: 1, 32>}, {pipeline_mode = #tpu.pipeline_mode<synchronous>, transform_indices = @transform_16, window_bounds = array<i64: 1, 512>}, {pipeline_mode = #tpu.pipeline_mode<synchronous>, transform_indices = @transform_17, window_bounds = array<i64: 32, 4>}, {pipeline_mode = #tpu.pipeline_mode<synchronous>, transform_indices = @transform_18, window_bounds = array<i64: 4, 32>}, {transform_indices = @transform_19, window_bounds = array<i64: 3>}, {transform_indices = @transform_20, window_bounds = array<i64: 2, 128>}]} {
    %c0_i32 = arith.constant 0 : i32
    %0 = arith.cmpi eq, %arg1, %c0_i32 : i32
    %1 = arith.extui %0 : i1 to i32
    %c0_i32_0 = arith.constant 0 : i32
    %2 = arith.cmpi ne, %1, %c0_i32_0 : i32
    scf.if %2 {
      %cst_11 = arith.constant 0.000000e+00 : f32
      %16 = vector.broadcast %cst_11 : f32 to vector<2x32xf32>
      %c0_12 = arith.constant 0 : index
      %c0_13 = arith.constant 0 : index
      %17 = vector.load %arg23[%c0_12, %c0_13] : memref<2x32xf32, #tpu.memory_space<vmem>>, vector<2x32xf32>
      tpu.vector_store %arg23[%c0_12, %c0_13], %16 {strides = array<i32>} : memref<2x32xf32, #tpu.memory_space<vmem>>, vector<2x32xf32>,
    } else {
    }
    %c0 = arith.constant 0 : index
    %c0_1 = arith.constant 0 : index
    %c0_2 = arith.constant 0 : index
    %3 = vector.load %arg2[%c0, %c0_1, %c0_2] : memref<2x8x32xbf16, #tpu.memory_space<vmem>>, vector<2x8x32xbf16>
    %c0_3 = arith.constant 0 : index
    %c0_4 = arith.constant 0 : index
    %4 = vector.load %arg3[%c0_3, %c0_4] : memref<2x8xbf16, #tpu.memory_space<vmem>>, vector<2x8xbf16>
    %5 = vector.shape_cast %4 : vector<2x8xbf16> to vector<2x8x1xbf16>
    %6 = vector.broadcast %5 : vector<2x8x1xbf16> to vector<2x8x32xbf16>
    %7 = arith.mulf %3, %6 : vector<2x8x32xbf16>
    %c0_5 = arith.constant 0 : index
    %c0_6 = arith.constant 0 : index
    %8 = vector.load %arg23[%c0_5, %c0_6] : memref<2x32xf32, #tpu.memory_space<vmem>>, vector<2x32xf32>
    %9 = arith.extf %7 : vector<2x8x32xbf16> to vector<2x8x32xf32>
    %cst = arith.constant dense<0.000000e+00> : vector<2x32xf32>
    %10 = vector.multi_reduction <add>, %9, %cst [1] : vector<2x8x32xf32> to vector<2x32xf32>
    %11 = arith.addf %8, %10 : vector<2x32xf32>
    %c0_7 = arith.constant 0 : index
    %c0_8 = arith.constant 0 : index
    %12 = vector.load %arg23[%c0_7, %c0_8] : memref<2x32xf32, #tpu.memory_space<vmem>>, vector<2x32xf32>
    tpu.vector_store %arg23[%c0_7, %c0_8], %11 {strides = array<i32>} : memref<2x32xf32, #tpu.memory_space<vmem>>, vector<2x32xf32>,
    %c0_i32_9 = arith.constant 0 : i32
    %13 = arith.cmpi eq, %arg1, %c0_i32_9 : i32
    %14 = arith.extui %13 : i1 to i32
    %c0_i32_10 = arith.constant 0 : i32
    %15 = arith.cmpi ne, %14, %c0_i32_10 : i32
    scf.if %15 {
      %c0_11 = arith.constant 0 : index
      %c0_12 = arith.constant 0 : index
      %16 = vector.load %arg23[%c0_11, %c0_12] : memref<2x32xf32, #tpu.memory_space<vmem>>, vector<2x32xf32>
      %c0_13 = arith.constant 0 : index
      %c0_14 = arith.constant 0 : index
      %17 = vector.load %arg4[%c0_13, %c0_14] : memref<2x1xf32, #tpu.memory_space<vmem>>, vector<2x1xf32>
      %18 = vector.broadcast %17 : vector<2x1xf32> to vector<2x32xf32>
      %19 = arith.mulf %16, %18 : vector<2x32xf32>
      %c0_15 = arith.constant 0 : index
      %c0_16 = arith.constant 0 : index
      %20 = vector.load %arg5[%c0_15, %c0_16] : memref<2x32xf32, #tpu.memory_space<vmem>>, vector<2x32xf32>
      %c0_17 = arith.constant 0 : index
      %21 = memref.load %arg21[%c0_17] : memref<3xf32, #tpu.memory_space<smem>>
      %c1 = arith.constant 1 : index
      %22 = memref.load %arg21[%c1] : memref<3xf32, #tpu.memory_space<smem>>
      %c2 = arith.constant 2 : index
      %23 = memref.load %arg21[%c2] : memref<3xf32, #tpu.memory_space<smem>>
      %c0_18 = arith.constant 0 : index
      %c0_19 = arith.constant 0 : index
      %24 = vector.load %arg16[%c0_18, %c0_19] : memref<1x32xf32, #tpu.memory_space<vmem>>, vector<1x32xf32>
      %25 = vector.broadcast %24 : vector<1x32xf32> to vector<2x32xf32>
      %26 = arith.mulf %20, %25 : vector<2x32xf32>
      %cst_20 = arith.constant dense<0.000000e+00> : vector<2xf32>
      %27 = vector.multi_reduction <add>, %26, %cst_20 [1] : vector<2x32xf32> to vector<2xf32>
      %28 = vector.shape_cast %27 : vector<2xf32> to vector<2x1xf32>
      %29 = vector.broadcast %21 : f32 to vector<2x1xf32>
      %30 = arith.addf %28, %29 : vector<2x1xf32>
      %c0_21 = arith.constant 0 : index
      %c0_22 = arith.constant 0 : index
      %31 = vector.load %arg17[%c0_21, %c0_22] : memref<1x32xf32, #tpu.memory_space<vmem>>, vector<1x32xf32>
      %32 = vector.broadcast %31 : vector<1x32xf32> to vector<2x32xf32>
      %33 = arith.mulf %19, %32 : vector<2x32xf32>
      %cst_23 = arith.constant dense<0.000000e+00> : vector<2xf32>
      %34 = vector.multi_reduction <add>, %33, %cst_23 [1] : vector<2x32xf32> to vector<2xf32>
      %35 = vector.shape_cast %34 : vector<2xf32> to vector<2x1xf32>
      %36 = vector.broadcast %22 : f32 to vector<2x1xf32>
      %37 = arith.addf %35, %36 : vector<2x1xf32>
      %c0_24 = arith.constant 0 : index
      %c0_25 = arith.constant 0 : index
      %38 = vector.load %arg6[%c0_24, %c0_25] : memref<2x32xf32, #tpu.memory_space<vmem>>, vector<2x32xf32>
      %c0_26 = arith.constant 0 : index
      %c0_27 = arith.constant 0 : index
      %39 = vector.load %arg7[%c0_26, %c0_27] : memref<2x32xf32, #tpu.memory_space<vmem>>, vector<2x32xf32>
      %40 = arith.addf %38, %39 : vector<2x32xf32>
      %cst_28 = arith.constant 5.000000e-01 : f32
      %41 = vector.broadcast %cst_28 : f32 to vector<2x32xf32>
      %42 = arith.mulf %41, %40 : vector<2x32xf32>
      %43 = arith.truncf %42 : vector<2x32xf32> to vector<2x32xbf16>
      %c0_29 = arith.constant 0 : index
      %c0_30 = arith.constant 0 : index
      %44 = vector.load %arg8[%c0_29, %c0_30] : memref<32x32xbf16, #tpu.memory_space<vmem>>, vector<32x32xbf16>
      %cst_31 = arith.constant dense<0.000000e+00> : vector<2x32xf32>
      %45 = tpu.matmul %43, %44, %cst_31 {dimension_numbers = #tpu.dot_dimension_numbers<[1], [0], [0], [1], [0, 0, 1, 1], [], []>} : vector<2x32xbf16>, vector<32x32xbf16>, vector<2x32xf32> -> vector<2x32xf32>
      %c0_32 = arith.constant 0 : index
      %c0_33 = arith.constant 0 : index
      %46 = vector.load %arg9[%c0_32, %c0_33] : memref<1x32xf32, #tpu.memory_space<vmem>>, vector<1x32xf32>
      %47 = vector.broadcast %46 : vector<1x32xf32> to vector<2x32xf32>
      %48 = arith.addf %45, %47 : vector<2x32xf32>
      %49 = tpu.concatenate %38, %39 in 0 : vector<2x32xf32>, vector<2x32xf32> -> vector<4x32xf32>
      %50 = arith.truncf %49 : vector<4x32xf32> to vector<4x32xbf16>
      %c0_34 = arith.constant 0 : index
      %c0_35 = arith.constant 0 : index
      %51 = vector.load %arg10[%c0_34, %c0_35] : memref<32x64xbf16, #tpu.memory_space<vmem>>, vector<32x64xbf16>
      %cst_36 = arith.constant dense<0.000000e+00> : vector<4x64xf32>
      %52 = tpu.matmul %50, %51, %cst_36 {dimension_numbers = #tpu.dot_dimension_numbers<[1], [0], [0], [1], [0, 0, 1, 1], [], []>} : vector<4x32xbf16>, vector<32x64xbf16>, vector<4x64xf32> -> vector<4x64xf32>
      %c0_37 = arith.constant 0 : index
      %c0_38 = arith.constant 0 : index
      %53 = vector.load %arg11[%c0_37, %c0_38] : memref<1x64xf32, #tpu.memory_space<vmem>>, vector<1x64xf32>
      %54 = vector.broadcast %53 : vector<1x64xf32> to vector<4x64xf32>
      %55 = arith.addf %52, %54 : vector<4x64xf32>
      %56 = vector.extract_strided_slice %55 {offsets = [0, 0], sizes = [2, 32], strides = [1, 1]} : vector<4x64xf32> to vector<2x32xf32>
      %57 = vector.extract_strided_slice %55 {offsets = [2, 0], sizes = [2, 32], strides = [1, 1]} : vector<4x64xf32> to vector<2x32xf32>
      %58 = vector.extract_strided_slice %55 {offsets = [0, 32], sizes = [2, 32], strides = [1, 1]} : vector<4x64xf32> to vector<2x32xf32>
      %59 = vector.extract_strided_slice %55 {offsets = [2, 32], sizes = [2, 32], strides = [1, 1]} : vector<4x64xf32> to vector<2x32xf32>
      %60 = arith.mulf %48, %56 : vector<2x32xf32>
      %61 = arith.mulf %48, %57 : vector<2x32xf32>
      %62 = tpu.concatenate %60, %61 in 0 : vector<2x32xf32>, vector<2x32xf32> -> vector<4x32xf32>
      %c0_39 = arith.constant 0 : index
      %c0_40 = arith.constant 0 : index
      %63 = vector.load %arg19[%c0_39, %c0_40] : memref<32x4xf32, #tpu.memory_space<vmem>>, vector<32x4xf32>
      %cst_41 = arith.constant dense<0.000000e+00> : vector<4x4xf32>
      %64 = tpu.matmul %62, %63, %cst_41 {dimension_numbers = #tpu.dot_dimension_numbers<[1], [0], [0], [1], [0, 0, 1, 1], [], []>} : vector<4x32xf32>, vector<32x4xf32>, vector<4x4xf32> -> vector<4x4xf32>
      %cst_42 = arith.constant 0.353553385 : f32
      %65 = vector.broadcast %cst_42 : f32 to vector<4x4xf32>
      %66 = arith.mulf %64, %65 : vector<4x4xf32>
      %67 = vector.extract_strided_slice %66 {offsets = [0, 0], sizes = [2, 4], strides = [1, 1]} : vector<4x4xf32> to vector<2x4xf32>
      %68 = vector.extract_strided_slice %66 {offsets = [2, 0], sizes = [2, 4], strides = [1, 1]} : vector<4x4xf32> to vector<2x4xf32>
      %69 = arith.maximumf %67, %68 : vector<2x4xf32>
      %70 = arith.subf %67, %69 : vector<2x4xf32>
      %71 = math.exp %70 : vector<2x4xf32>
      %72 = arith.subf %68, %69 : vector<2x4xf32>
      %73 = math.exp %72 : vector<2x4xf32>
      %74 = arith.addf %71, %73 : vector<2x4xf32>
      %75 = tpu.reciprocal %74 {approx = true} : vector<2x4xf32> -> vector<2x4xf32>
      %76 = arith.mulf %71, %75 : vector<2x4xf32>
      %77 = arith.mulf %73, %75 : vector<2x4xf32>
      %78 = tpu.concatenate %76, %77 in 0 : vector<2x4xf32>, vector<2x4xf32> -> vector<4x4xf32>
      %c0_43 = arith.constant 0 : index
      %c0_44 = arith.constant 0 : index
      %79 = vector.load %arg20[%c0_43, %c0_44] : memref<4x32xf32, #tpu.memory_space<vmem>>, vector<4x32xf32>
      %cst_45 = arith.constant dense<0.000000e+00> : vector<4x32xf32>
      %80 = tpu.matmul %78, %79, %cst_45 {dimension_numbers = #tpu.dot_dimension_numbers<[1], [0], [0], [1], [0, 0, 1, 1], [], []>} : vector<4x4xf32>, vector<4x32xf32>, vector<4x32xf32> -> vector<4x32xf32>
      %81 = vector.extract_strided_slice %80 {offsets = [0, 0], sizes = [2, 32], strides = [1, 1]} : vector<4x32xf32> to vector<2x32xf32>
      %82 = arith.mulf %81, %58 : vector<2x32xf32>
      %83 = vector.extract_strided_slice %80 {offsets = [2, 0], sizes = [2, 32], strides = [1, 1]} : vector<4x32xf32> to vector<2x32xf32>
      %84 = arith.mulf %83, %59 : vector<2x32xf32>
      %85 = arith.addf %82, %84 : vector<2x32xf32>
      %86 = arith.truncf %85 : vector<2x32xf32> to vector<2x32xbf16>
      %c0_46 = arith.constant 0 : index
      %c0_47 = arith.constant 0 : index
      %87 = vector.load %arg12[%c0_46, %c0_47] : memref<32x32xbf16, #tpu.memory_space<vmem>>, vector<32x32xbf16>
      %cst_48 = arith.constant dense<0.000000e+00> : vector<2x32xf32>
      %88 = tpu.matmul %86, %87, %cst_48 {dimension_numbers = #tpu.dot_dimension_numbers<[1], [0], [0], [1], [0, 0, 1, 1], [], []>} : vector<2x32xbf16>, vector<32x32xbf16>, vector<2x32xf32> -> vector<2x32xf32>
      %c0_49 = arith.constant 0 : index
      %c0_50 = arith.constant 0 : index
      %89 = vector.load %arg13[%c0_49, %c0_50] : memref<1x32xf32, #tpu.memory_space<vmem>>, vector<1x32xf32>
      %90 = vector.broadcast %89 : vector<1x32xf32> to vector<2x32xf32>
      %91 = arith.addf %88, %90 : vector<2x32xf32>
      %92 = arith.addf %91, %42 : vector<2x32xf32>
      %93 = arith.truncf %92 : vector<2x32xf32> to vector<2x32xbf16>
      %c0_51 = arith.constant 0 : index
      %c0_52 = arith.constant 0 : index
      %94 = vector.load %arg14[%c0_51, %c0_52] : memref<32x512xbf16, #tpu.memory_space<vmem>>, vector<32x512xbf16>
      %cst_53 = arith.constant dense<0.000000e+00> : vector<2x512xf32>
      %95 = tpu.matmul %93, %94, %cst_53 {dimension_numbers = #tpu.dot_dimension_numbers<[1], [0], [0], [1], [0, 0, 1, 1], [], []>} : vector<2x32xbf16>, vector<32x512xbf16>, vector<2x512xf32> -> vector<2x512xf32>
      %c0_54 = arith.constant 0 : index
      %c0_55 = arith.constant 0 : index
      %96 = vector.load %arg15[%c0_54, %c0_55] : memref<1x512xf32, #tpu.memory_space<vmem>>, vector<1x512xf32>
      %97 = vector.broadcast %96 : vector<1x512xf32> to vector<2x512xf32>
      %98 = arith.addf %95, %97 : vector<2x512xf32>
      %cst_56 = arith.constant 0.000000e+00 : f32
      %99 = vector.broadcast %cst_56 : f32 to vector<2x512xf32>
      %100 = arith.maximumf %98, %99 : vector<2x512xf32>
      %c0_57 = arith.constant 0 : index
      %c0_58 = arith.constant 0 : index
      %101 = vector.load %arg18[%c0_57, %c0_58] : memref<1x512xf32, #tpu.memory_space<vmem>>, vector<1x512xf32>
      %102 = vector.broadcast %101 : vector<1x512xf32> to vector<2x512xf32>
      %103 = arith.mulf %100, %102 : vector<2x512xf32>
      %cst_59 = arith.constant dense<0.000000e+00> : vector<2xf32>
      %104 = vector.multi_reduction <add>, %103, %cst_59 [1] : vector<2x512xf32> to vector<2xf32>
      %105 = vector.shape_cast %104 : vector<2xf32> to vector<2x1xf32>
      %106 = vector.broadcast %23 : f32 to vector<2x1xf32>
      %107 = arith.addf %105, %106 : vector<2x1xf32>
      %108 = tpu.iota {dimensions = array<i32: 1>} : vector<2x128xi32>
      %c0_i32_60 = arith.constant 0 : i32
      %109 = vector.broadcast %c0_i32_60 : i32 to vector<2x128xi32>
      %110 = arith.cmpi eq, %108, %109 : vector<2x128xi32>
      %cst_61 = arith.constant 0.000000e+00 : f32
      %111 = vector.shape_cast %30 : vector<2x1xf32> to vector<2x1xf32>
      %112 = vector.broadcast %111 : vector<2x1xf32> to vector<2x128xf32>
      %113 = vector.broadcast %cst_61 : f32 to vector<2x128xf32>
      %114 = arith.select %110, %112, %113 : vector<2x128xi1>, vector<2x128xf32>
      %c1_i32 = arith.constant 1 : i32
      %115 = vector.broadcast %c1_i32 : i32 to vector<2x128xi32>
      %116 = arith.cmpi eq, %108, %115 : vector<2x128xi32>
      %cst_62 = arith.constant 0.000000e+00 : f32
      %117 = vector.shape_cast %37 : vector<2x1xf32> to vector<2x1xf32>
      %118 = vector.broadcast %117 : vector<2x1xf32> to vector<2x128xf32>
      %119 = vector.broadcast %cst_62 : f32 to vector<2x128xf32>
      %120 = arith.select %116, %118, %119 : vector<2x128xi1>, vector<2x128xf32>
      %121 = arith.addf %114, %120 : vector<2x128xf32>
      %c2_i32 = arith.constant 2 : i32
      %122 = vector.broadcast %c2_i32 : i32 to vector<2x128xi32>
      %123 = arith.cmpi eq, %108, %122 : vector<2x128xi32>
      %cst_63 = arith.constant 0.000000e+00 : f32
      %124 = vector.shape_cast %107 : vector<2x1xf32> to vector<2x1xf32>
      %125 = vector.broadcast %124 : vector<2x1xf32> to vector<2x128xf32>
      %126 = vector.broadcast %cst_63 : f32 to vector<2x128xf32>
      %127 = arith.select %123, %125, %126 : vector<2x128xi1>, vector<2x128xf32>
      %128 = arith.addf %121, %127 : vector<2x128xf32>
      %c0_64 = arith.constant 0 : index
      %c0_65 = arith.constant 0 : index
      %129 = vector.load %arg22[%c0_64, %c0_65] : memref<2x128xf32, #tpu.memory_space<vmem>>, vector<2x128xf32>
      tpu.vector_store %arg22[%c0_64, %c0_65], %128 {strides = array<i32>} : memref<2x128xf32, #tpu.memory_space<vmem>>, vector<2x128xf32>,
    } else {
    }
    return
  }
  func.func @transform_0(%arg0: i32, %arg1: i32) -> (i32, i32, i32) {
    %c0_i32 = arith.constant 0 : i32
    %c0_i32_0 = arith.constant 0 : i32
    return %arg0, %arg1, %c0_i32 : i32, i32, i32
  }
  func.func @transform_1(%arg0: i32, %arg1: i32) -> (i32, i32) {
    %c0_i32 = arith.constant 0 : i32
    return %arg0, %arg1 : i32, i32
  }
  func.func @transform_2(%arg0: i32, %arg1: i32) -> (i32, i32) {
    %c0_i32 = arith.constant 0 : i32
    %c0_i32_0 = arith.constant 0 : i32
    return %arg0, %c0_i32 : i32, i32
  }
  func.func @transform_3(%arg0: i32, %arg1: i32) -> (i32, i32) {
    %c0_i32 = arith.constant 0 : i32
    %c0_i32_0 = arith.constant 0 : i32
    return %arg0, %c0_i32 : i32, i32
  }
  func.func @transform_4(%arg0: i32, %arg1: i32) -> (i32, i32) {
    %c0_i32 = arith.constant 0 : i32
    %c0_i32_0 = arith.constant 0 : i32
    return %arg0, %c0_i32 : i32, i32
  }
  func.func @transform_5(%arg0: i32, %arg1: i32) -> (i32, i32) {
    %c0_i32 = arith.constant 0 : i32
    %c0_i32_0 = arith.constant 0 : i32
    return %arg0, %c0_i32 : i32, i32
  }
  func.func @transform_6(%arg0: i32, %arg1: i32) -> (i32, i32) {
    %c0_i32 = arith.constant 0 : i32
    %c0_i32_0 = arith.constant 0 : i32
    %c0_i32_1 = arith.constant 0 : i32
    return %c0_i32, %c0_i32_0 : i32, i32
  }
  func.func @transform_7(%arg0: i32, %arg1: i32) -> (i32, i32) {
    %c0_i32 = arith.constant 0 : i32
    %c0_i32_0 = arith.constant 0 : i32
    %c0_i32_1 = arith.constant 0 : i32
    return %c0_i32, %c0_i32_0 : i32, i32
  }
  func.func @transform_8(%arg0: i32, %arg1: i32) -> (i32, i32) {
    %c0_i32 = arith.constant 0 : i32
    %c0_i32_0 = arith.constant 0 : i32
    %c0_i32_1 = arith.constant 0 : i32
    return %c0_i32, %c0_i32_0 : i32, i32
  }
  func.func @transform_9(%arg0: i32, %arg1: i32) -> (i32, i32) {
    %c0_i32 = arith.constant 0 : i32
    %c0_i32_0 = arith.constant 0 : i32
    %c0_i32_1 = arith.constant 0 : i32
    return %c0_i32, %c0_i32_0 : i32, i32
  }
  func.func @transform_10(%arg0: i32, %arg1: i32) -> (i32, i32) {
    %c0_i32 = arith.constant 0 : i32
    %c0_i32_0 = arith.constant 0 : i32
    %c0_i32_1 = arith.constant 0 : i32
    return %c0_i32, %c0_i32_0 : i32, i32
  }
  func.func @transform_11(%arg0: i32, %arg1: i32) -> (i32, i32) {
    %c0_i32 = arith.constant 0 : i32
    %c0_i32_0 = arith.constant 0 : i32
    %c0_i32_1 = arith.constant 0 : i32
    return %c0_i32, %c0_i32_0 : i32, i32
  }
  func.func @transform_12(%arg0: i32, %arg1: i32) -> (i32, i32) {
    %c0_i32 = arith.constant 0 : i32
    %c0_i32_0 = arith.constant 0 : i32
    %c0_i32_1 = arith.constant 0 : i32
    return %c0_i32, %c0_i32_0 : i32, i32
  }
  func.func @transform_13(%arg0: i32, %arg1: i32) -> (i32, i32) {
    %c0_i32 = arith.constant 0 : i32
    %c0_i32_0 = arith.constant 0 : i32
    %c0_i32_1 = arith.constant 0 : i32
    return %c0_i32, %c0_i32_0 : i32, i32
  }
  func.func @transform_14(%arg0: i32, %arg1: i32) -> (i32, i32) {
    %c0_i32 = arith.constant 0 : i32
    %c0_i32_0 = arith.constant 0 : i32
    %c0_i32_1 = arith.constant 0 : i32
    return %c0_i32, %c0_i32_0 : i32, i32
  }
  func.func @transform_15(%arg0: i32, %arg1: i32) -> (i32, i32) {
    %c0_i32 = arith.constant 0 : i32
    %c0_i32_0 = arith.constant 0 : i32
    %c0_i32_1 = arith.constant 0 : i32
    return %c0_i32, %c0_i32_0 : i32, i32
  }
  func.func @transform_16(%arg0: i32, %arg1: i32) -> (i32, i32) {
    %c0_i32 = arith.constant 0 : i32
    %c0_i32_0 = arith.constant 0 : i32
    %c0_i32_1 = arith.constant 0 : i32
    return %c0_i32, %c0_i32_0 : i32, i32
  }
  func.func @transform_17(%arg0: i32, %arg1: i32) -> (i32, i32) {
    %c0_i32 = arith.constant 0 : i32
    %c0_i32_0 = arith.constant 0 : i32
    %c0_i32_1 = arith.constant 0 : i32
    return %c0_i32, %c0_i32_0 : i32, i32
  }
  func.func @transform_18(%arg0: i32, %arg1: i32) -> (i32, i32) {
    %c0_i32 = arith.constant 0 : i32
    %c0_i32_0 = arith.constant 0 : i32
    %c0_i32_1 = arith.constant 0 : i32
    return %c0_i32, %c0_i32_0 : i32, i32
  }
  func.func @transform_19(%arg0: i32, %arg1: i32) -> i32 {
    %c0_i32 = arith.constant 0 : i32
    %c0_i32_0 = arith.constant 0 : i32
    return %c0_i32 : i32
  }
  func.func @transform_20(%arg0: i32, %arg1: i32) -> (i32, i32) {
    %c0_i32 = arith.constant 0 : i32
    %c0_i32_0 = arith.constant 0 : i32
    return %arg0, %c0_i32 : i32, i32
  }
}

module attributes {stable_mosaic.version = 11 : i64} {
  func.func @fusion_heads_kernel(%arg0: i32, %arg1: i32, %arg2: memref<2x8x32xbf16, #tpu.memory_space<vmem>>, %arg3: memref<2x8xbf16, #tpu.memory_space<vmem>>, %arg4: memref<2x1xf32, #tpu.memory_space<vmem>>, %arg5: memref<2x32xf32, #tpu.memory_space<vmem>>, %arg6: memref<2x32xf32, #tpu.memory_space<vmem>>, %arg7: memref<2x32xf32, #tpu.memory_space<vmem>>, %arg8: memref<32x32xbf16, #tpu.memory_space<vmem>>, %arg9: memref<1x32xf32, #tpu.memory_space<vmem>>, %arg10: memref<32x64xbf16, #tpu.memory_space<vmem>>, %arg11: memref<1x64xf32, #tpu.memory_space<vmem>>, %arg12: memref<32x32xbf16, #tpu.memory_space<vmem>>, %arg13: memref<1x32xf32, #tpu.memory_space<vmem>>, %arg14: memref<32x512xbf16, #tpu.memory_space<vmem>>, %arg15: memref<1x512xf32, #tpu.memory_space<vmem>>, %arg16: memref<1x32xf32, #tpu.memory_space<vmem>>, %arg17: memref<1x32xf32, #tpu.memory_space<vmem>>, %arg18: memref<1x512xf32, #tpu.memory_space<vmem>>, %arg19: memref<32x4xf32, #tpu.memory_space<vmem>>, %arg20: memref<4x32xf32, #tpu.memory_space<vmem>>, %arg21: memref<3xf32, #tpu.memory_space<smem>>, %arg22: memref<2x128xf32, #tpu.memory_space<vmem>>, %arg23: memref<2x32xf32, #tpu.memory_space<vmem>>) attributes {dimension_semantics = [#tpu.dimension_semantics<parallel>, #tpu.dimension_semantics<arbitrary>], iteration_bounds = array<i64: 1, 1>, scalar_prefetch = 0 : i64, scratch_operands = 1 : i64, tpu.core_type = #tpu.core_type<tc>, window_params = [{transform_indices = @transform_0, window_bounds = array<i64: 2, 8, 32>}, {transform_indices = @transform_1, window_bounds = array<i64: 2, 8>}, {transform_indices = @transform_2, window_bounds = array<i64: 2, 1>}, {transform_indices = @transform_3, window_bounds = array<i64: 2, 32>}, {transform_indices = @transform_4, window_bounds = array<i64: 2, 32>}, {transform_indices = @transform_5, window_bounds = array<i64: 2, 32>}, {pipeline_mode = #tpu.pipeline_mode<synchronous>, transform_indices = @transform_6, window_bounds = array<i64: 32, 32>}, {pipeline_mode = #tpu.pipeline_mode<synchronous>, transform_indices = @transform_7, window_bounds = array<i64: 1, 32>}, {pipeline_mode = #tpu.pipeline_mode<synchronous>, transform_indices = @transform_8, window_bounds = array<i64: 32, 64>}, {pipeline_mode = #tpu.pipeline_mode<synchronous>, transform_indices = @transform_9, window_bounds = array<i64: 1, 64>}, {pipeline_mode = #tpu.pipeline_mode<synchronous>, transform_indices = @transform_10, window_bounds = array<i64: 32, 32>}, {pipeline_mode = #tpu.pipeline_mode<synchronous>, transform_indices = @transform_11, window_bounds = array<i64: 1, 32>}, {pipeline_mode = #tpu.pipeline_mode<synchronous>, transform_indices = @transform_12, window_bounds = array<i64: 32, 512>}, {pipeline_mode = #tpu.pipeline_mode<synchronous>, transform_indices = @transform_13, window_bounds = array<i64: 1, 512>}, {pipeline_mode = #tpu.pipeline_mode<synchronous>, transform_indices = @transform_14, window_bounds = array<i64: 1, 32>}, {pipeline_mode = #tpu.pipeline_mode<synchronous>, transform_indices = @transform_15, window_bounds = array<i64: 1, 32>}, {pipeline_mode = #tpu.pipeline_mode<synchronous>, transform_indices = @transform_16, window_bounds = array<i64: 1, 512>}, {pipeline_mode = #tpu.pipeline_mode<synchronous>, transform_indices = @transform_17, window_bounds = array<i64: 32, 4>}, {pipeline_mode = #tpu.pipeline_mode<synchronous>, transform_indices = @transform_18, window_bounds = array<i64: 4, 32>}, {transform_indices = @transform_19, window_bounds = array<i64: 3>}, {transform_indices = @transform_20, window_bounds = array<i64: 2, 128>}]} {
    %c0_i32 = arith.constant 0 : i32
    %0 = arith.cmpi eq, %arg1, %c0_i32 : i32
    %1 = arith.extui %0 : i1 to i32
    %c0_i32_0 = arith.constant 0 : i32
    %2 = arith.cmpi ne, %1, %c0_i32_0 : i32
    scf.if %2 {
      %cst_11 = arith.constant 0.000000e+00 : f32
      %16 = vector.broadcast %cst_11 : f32 to vector<2x32xf32>
      %c0_12 = arith.constant 0 : index
      %c0_13 = arith.constant 0 : index
      %17 = vector.load %arg23[%c0_12, %c0_13] : memref<2x32xf32, #tpu.memory_space<vmem>>, vector<2x32xf32>
      tpu.vector_store %arg23[%c0_12, %c0_13], %16 {strides = array<i32>} : memref<2x32xf32, #tpu.memory_space<vmem>>, vector<2x32xf32>,
    } else {
    }
    %c0 = arith.constant 0 : index
    %c0_1 = arith.constant 0 : index
    %c0_2 = arith.constant 0 : index
    %3 = vector.load %arg2[%c0, %c0_1, %c0_2] : memref<2x8x32xbf16, #tpu.memory_space<vmem>>, vector<2x8x32xbf16>
    %c0_3 = arith.constant 0 : index
    %c0_4 = arith.constant 0 : index
    %4 = vector.load %arg3[%c0_3, %c0_4] : memref<2x8xbf16, #tpu.memory_space<vmem>>, vector<2x8xbf16>
    %5 = vector.shape_cast %4 : vector<2x8xbf16> to vector<2x8x1xbf16>
    %6 = vector.broadcast %5 : vector<2x8x1xbf16> to vector<2x8x32xbf16>
    %7 = arith.mulf %3, %6 : vector<2x8x32xbf16>
    %c0_5 = arith.constant 0 : index
    %c0_6 = arith.constant 0 : index
    %8 = vector.load %arg23[%c0_5, %c0_6] : memref<2x32xf32, #tpu.memory_space<vmem>>, vector<2x32xf32>
    %9 = arith.extf %7 : vector<2x8x32xbf16> to vector<2x8x32xf32>
    %cst = arith.constant dense<0.000000e+00> : vector<2x32xf32>
    %10 = vector.multi_reduction <add>, %9, %cst [1] : vector<2x8x32xf32> to vector<2x32xf32>
    %11 = arith.addf %8, %10 : vector<2x32xf32>
    %c0_7 = arith.constant 0 : index
    %c0_8 = arith.constant 0 : index
    %12 = vector.load %arg23[%c0_7, %c0_8] : memref<2x32xf32, #tpu.memory_space<vmem>>, vector<2x32xf32>
    tpu.vector_store %arg23[%c0_7, %c0_8], %11 {strides = array<i32>} : memref<2x32xf32, #tpu.memory_space<vmem>>, vector<2x32xf32>,
    %c0_i32_9 = arith.constant 0 : i32
    %13 = arith.cmpi eq, %arg1, %c0_i32_9 : i32
    %14 = arith.extui %13 : i1 to i32
    %c0_i32_10 = arith.constant 0 : i32
    %15 = arith.cmpi ne, %14, %c0_i32_10 : i32
    scf.if %15 {
      %c0_11 = arith.constant 0 : index
      %c0_12 = arith.constant 0 : index
      %16 = vector.load %arg23[%c0_11, %c0_12] : memref<2x32xf32, #tpu.memory_space<vmem>>, vector<2x32xf32>
      %c0_13 = arith.constant 0 : index
      %c0_14 = arith.constant 0 : index
      %17 = vector.load %arg4[%c0_13, %c0_14] : memref<2x1xf32, #tpu.memory_space<vmem>>, vector<2x1xf32>
      %18 = vector.broadcast %17 : vector<2x1xf32> to vector<2x32xf32>
      %19 = arith.mulf %16, %18 : vector<2x32xf32>
      %c0_15 = arith.constant 0 : index
      %c0_16 = arith.constant 0 : index
      %20 = vector.load %arg5[%c0_15, %c0_16] : memref<2x32xf32, #tpu.memory_space<vmem>>, vector<2x32xf32>
      %c0_17 = arith.constant 0 : index
      %21 = memref.load %arg21[%c0_17] : memref<3xf32, #tpu.memory_space<smem>>
      %c1 = arith.constant 1 : index
      %22 = memref.load %arg21[%c1] : memref<3xf32, #tpu.memory_space<smem>>
      %c2 = arith.constant 2 : index
      %23 = memref.load %arg21[%c2] : memref<3xf32, #tpu.memory_space<smem>>
      %c0_18 = arith.constant 0 : index
      %c0_19 = arith.constant 0 : index
      %24 = vector.load %arg16[%c0_18, %c0_19] : memref<1x32xf32, #tpu.memory_space<vmem>>, vector<1x32xf32>
      %25 = vector.broadcast %24 : vector<1x32xf32> to vector<2x32xf32>
      %26 = arith.mulf %20, %25 : vector<2x32xf32>
      %cst_20 = arith.constant dense<0.000000e+00> : vector<2xf32>
      %27 = vector.multi_reduction <add>, %26, %cst_20 [1] : vector<2x32xf32> to vector<2xf32>
      %28 = vector.shape_cast %27 : vector<2xf32> to vector<2x1xf32>
      %29 = vector.broadcast %21 : f32 to vector<2x1xf32>
      %30 = arith.addf %28, %29 : vector<2x1xf32>
      %c0_21 = arith.constant 0 : index
      %c0_22 = arith.constant 0 : index
      %31 = vector.load %arg17[%c0_21, %c0_22] : memref<1x32xf32, #tpu.memory_space<vmem>>, vector<1x32xf32>
      %32 = vector.broadcast %31 : vector<1x32xf32> to vector<2x32xf32>
      %33 = arith.mulf %19, %32 : vector<2x32xf32>
      %cst_23 = arith.constant dense<0.000000e+00> : vector<2xf32>
      %34 = vector.multi_reduction <add>, %33, %cst_23 [1] : vector<2x32xf32> to vector<2xf32>
      %35 = vector.shape_cast %34 : vector<2xf32> to vector<2x1xf32>
      %36 = vector.broadcast %22 : f32 to vector<2x1xf32>
      %37 = arith.addf %35, %36 : vector<2x1xf32>
      %c0_24 = arith.constant 0 : index
      %c0_25 = arith.constant 0 : index
      %38 = vector.load %arg6[%c0_24, %c0_25] : memref<2x32xf32, #tpu.memory_space<vmem>>, vector<2x32xf32>
      %c0_26 = arith.constant 0 : index
      %c0_27 = arith.constant 0 : index
      %39 = vector.load %arg7[%c0_26, %c0_27] : memref<2x32xf32, #tpu.memory_space<vmem>>, vector<2x32xf32>
      %40 = arith.addf %38, %39 : vector<2x32xf32>
      %cst_28 = arith.constant 5.000000e-01 : f32
      %41 = vector.broadcast %cst_28 : f32 to vector<2x32xf32>
      %42 = arith.mulf %41, %40 : vector<2x32xf32>
      %43 = arith.truncf %42 : vector<2x32xf32> to vector<2x32xbf16>
      %c0_29 = arith.constant 0 : index
      %c0_30 = arith.constant 0 : index
      %44 = vector.load %arg8[%c0_29, %c0_30] : memref<32x32xbf16, #tpu.memory_space<vmem>>, vector<32x32xbf16>
      %cst_31 = arith.constant dense<0.000000e+00> : vector<2x32xf32>
      %45 = tpu.matmul %43, %44, %cst_31 {dimension_numbers = #tpu.dot_dimension_numbers<[1], [0], [0], [1], [0, 0, 1, 1], [], []>} : vector<2x32xbf16>, vector<32x32xbf16>, vector<2x32xf32> -> vector<2x32xf32>
      %c0_32 = arith.constant 0 : index
      %c0_33 = arith.constant 0 : index
      %46 = vector.load %arg9[%c0_32, %c0_33] : memref<1x32xf32, #tpu.memory_space<vmem>>, vector<1x32xf32>
      %47 = vector.broadcast %46 : vector<1x32xf32> to vector<2x32xf32>
      %48 = arith.addf %45, %47 : vector<2x32xf32>
      %49 = tpu.concatenate %38, %39 in 0 : vector<2x32xf32>, vector<2x32xf32> -> vector<4x32xf32>
      %50 = arith.truncf %49 : vector<4x32xf32> to vector<4x32xbf16>
      %c0_34 = arith.constant 0 : index
      %c0_35 = arith.constant 0 : index
      %51 = vector.load %arg10[%c0_34, %c0_35] : memref<32x64xbf16, #tpu.memory_space<vmem>>, vector<32x64xbf16>
      %cst_36 = arith.constant dense<0.000000e+00> : vector<4x64xf32>
      %52 = tpu.matmul %50, %51, %cst_36 {dimension_numbers = #tpu.dot_dimension_numbers<[1], [0], [0], [1], [0, 0, 1, 1], [], []>} : vector<4x32xbf16>, vector<32x64xbf16>, vector<4x64xf32> -> vector<4x64xf32>
      %c0_37 = arith.constant 0 : index
      %c0_38 = arith.constant 0 : index
      %53 = vector.load %arg11[%c0_37, %c0_38] : memref<1x64xf32, #tpu.memory_space<vmem>>, vector<1x64xf32>
      %54 = vector.broadcast %53 : vector<1x64xf32> to vector<4x64xf32>
      %55 = arith.addf %52, %54 : vector<4x64xf32>
      %56 = vector.extract_strided_slice %55 {offsets = [0, 0], sizes = [2, 32], strides = [1, 1]} : vector<4x64xf32> to vector<2x32xf32>
      %57 = vector.extract_strided_slice %55 {offsets = [2, 0], sizes = [2, 32], strides = [1, 1]} : vector<4x64xf32> to vector<2x32xf32>
      %58 = vector.extract_strided_slice %55 {offsets = [0, 32], sizes = [2, 32], strides = [1, 1]} : vector<4x64xf32> to vector<2x32xf32>
      %59 = vector.extract_strided_slice %55 {offsets = [2, 32], sizes = [2, 32], strides = [1, 1]} : vector<4x64xf32> to vector<2x32xf32>
      %60 = arith.mulf %48, %56 : vector<2x32xf32>
      %61 = arith.mulf %48, %57 : vector<2x32xf32>
      %62 = tpu.concatenate %60, %61 in 0 : vector<2x32xf32>, vector<2x32xf32> -> vector<4x32xf32>
      %c0_39 = arith.constant 0 : index
      %c0_40 = arith.constant 0 : index
      %63 = vector.load %arg19[%c0_39, %c0_40] : memref<32x4xf32, #tpu.memory_space<vmem>>, vector<32x4xf32>
      %cst_41 = arith.constant dense<0.000000e+00> : vector<4x4xf32>
      %64 = tpu.matmul %62, %63, %cst_41 {dimension_numbers = #tpu.dot_dimension_numbers<[1], [0], [0], [1], [0, 0, 1, 1], [], []>} : vector<4x32xf32>, vector<32x4xf32>, vector<4x4xf32> -> vector<4x4xf32>
      %cst_42 = arith.constant 0.353553385 : f32
      %65 = vector.broadcast %cst_42 : f32 to vector<4x4xf32>
      %66 = arith.mulf %64, %65 : vector<4x4xf32>
      %67 = vector.extract_strided_slice %66 {offsets = [0, 0], sizes = [2, 4], strides = [1, 1]} : vector<4x4xf32> to vector<2x4xf32>
      %68 = vector.extract_strided_slice %66 {offsets = [2, 0], sizes = [2, 4], strides = [1, 1]} : vector<4x4xf32> to vector<2x4xf32>
      %69 = arith.maximumf %67, %68 : vector<2x4xf32>
      %70 = arith.subf %67, %69 : vector<2x4xf32>
      %71 = math.exp %70 : vector<2x4xf32>
      %72 = arith.subf %68, %69 : vector<2x4xf32>
      %73 = math.exp %72 : vector<2x4xf32>
      %74 = arith.addf %71, %73 : vector<2x4xf32>
      %75 = tpu.reciprocal %74 {approx = true} : vector<2x4xf32> -> vector<2x4xf32>
      %76 = arith.mulf %71, %75 : vector<2x4xf32>
      %77 = arith.mulf %73, %75 : vector<2x4xf32>
      %78 = tpu.concatenate %76, %77 in 0 : vector<2x4xf32>, vector<2x4xf32> -> vector<4x4xf32>
      %c0_43 = arith.constant 0 : index
      %c0_44 = arith.constant 0 : index
      %79 = vector.load %arg20[%c0_43, %c0_44] : memref<4x32xf32, #tpu.memory_space<vmem>>, vector<4x32xf32>
      %cst_45 = arith.constant dense<0.000000e+00> : vector<4x32xf32>
      %80 = tpu.matmul %78, %79, %cst_45 {dimension_numbers = #tpu.dot_dimension_numbers<[1], [0], [0], [1], [0, 0, 1, 1], [], []>} : vector<4x4xf32>, vector<4x32xf32>, vector<4x32xf32> -> vector<4x32xf32>
      %81 = vector.extract_strided_slice %80 {offsets = [0, 0], sizes = [2, 32], strides = [1, 1]} : vector<4x32xf32> to vector<2x32xf32>
      %82 = arith.mulf %81, %58 : vector<2x32xf32>
      %83 = vector.extract_strided_slice %80 {offsets = [2, 0], sizes = [2, 32], strides = [1, 1]} : vector<4x32xf32> to vector<2x32xf32>
      %84 = arith.mulf %83, %59 : vector<2x32xf32>
      %85 = arith.addf %82, %84 : vector<2x32xf32>
      %86 = arith.truncf %85 : vector<2x32xf32> to vector<2x32xbf16>
      %c0_46 = arith.constant 0 : index
      %c0_47 = arith.constant 0 : index
      %87 = vector.load %arg12[%c0_46, %c0_47] : memref<32x32xbf16, #tpu.memory_space<vmem>>, vector<32x32xbf16>
      %cst_48 = arith.constant dense<0.000000e+00> : vector<2x32xf32>
      %88 = tpu.matmul %86, %87, %cst_48 {dimension_numbers = #tpu.dot_dimension_numbers<[1], [0], [0], [1], [0, 0, 1, 1], [], []>} : vector<2x32xbf16>, vector<32x32xbf16>, vector<2x32xf32> -> vector<2x32xf32>
      %c0_49 = arith.constant 0 : index
      %c0_50 = arith.constant 0 : index
      %89 = vector.load %arg13[%c0_49, %c0_50] : memref<1x32xf32, #tpu.memory_space<vmem>>, vector<1x32xf32>
      %90 = vector.broadcast %89 : vector<1x32xf32> to vector<2x32xf32>
      %91 = arith.addf %88, %90 : vector<2x32xf32>
      %92 = arith.addf %91, %42 : vector<2x32xf32>
      %93 = arith.truncf %92 : vector<2x32xf32> to vector<2x32xbf16>
      %c0_51 = arith.constant 0 : index
      %c0_52 = arith.constant 0 : index
      %94 = vector.load %arg14[%c0_51, %c0_52] : memref<32x512xbf16, #tpu.memory_space<vmem>>, vector<32x512xbf16>
      %cst_53 = arith.constant dense<0.000000e+00> : vector<2x512xf32>
      %95 = tpu.matmul %93, %94, %cst_53 {dimension_numbers = #tpu.dot_dimension_numbers<[1], [0], [0], [1], [0, 0, 1, 1], [], []>} : vector<2x32xbf16>, vector<32x512xbf16>, vector<2x512xf32> -> vector<2x512xf32>
      %c0_54 = arith.constant 0 : index
      %c0_55 = arith.constant 0 : index
      %96 = vector.load %arg15[%c0_54, %c0_55] : memref<1x512xf32, #tpu.memory_space<vmem>>, vector<1x512xf32>
      %97 = vector.broadcast %96 : vector<1x512xf32> to vector<2x512xf32>
      %98 = arith.addf %95, %97 : vector<2x512xf32>
      %cst_56 = arith.constant 0.000000e+00 : f32
      %99 = vector.broadcast %cst_56 : f32 to vector<2x512xf32>
      %100 = arith.maximumf %98, %99 : vector<2x512xf32>
      %c0_57 = arith.constant 0 : index
      %c0_58 = arith.constant 0 : index
      %101 = vector.load %arg18[%c0_57, %c0_58] : memref<1x512xf32, #tpu.memory_space<vmem>>, vector<1x512xf32>
      %102 = vector.broadcast %101 : vector<1x512xf32> to vector<2x512xf32>
      %103 = arith.mulf %100, %102 : vector<2x512xf32>
      %cst_59 = arith.constant dense<0.000000e+00> : vector<2xf32>
      %104 = vector.multi_reduction <add>, %103, %cst_59 [1] : vector<2x512xf32> to vector<2xf32>
      %105 = vector.shape_cast %104 : vector<2xf32> to vector<2x1xf32>
      %106 = vector.broadcast %23 : f32 to vector<2x1xf32>
      %107 = arith.addf %105, %106 : vector<2x1xf32>
      %108 = tpu.iota {dimensions = array<i32: 1>} : vector<2x128xi32>
      %c0_i32_60 = arith.constant 0 : i32
      %109 = vector.broadcast %c0_i32_60 : i32 to vector<2x128xi32>
      %110 = arith.cmpi eq, %108, %109 : vector<2x128xi32>
      %cst_61 = arith.constant 0.000000e+00 : f32
      %111 = vector.shape_cast %30 : vector<2x1xf32> to vector<2x1xf32>
      %112 = vector.broadcast %111 : vector<2x1xf32> to vector<2x128xf32>
      %113 = vector.broadcast %cst_61 : f32 to vector<2x128xf32>
      %114 = arith.select %110, %112, %113 : vector<2x128xi1>, vector<2x128xf32>
      %c1_i32 = arith.constant 1 : i32
      %115 = vector.broadcast %c1_i32 : i32 to vector<2x128xi32>
      %116 = arith.cmpi eq, %108, %115 : vector<2x128xi32>
      %cst_62 = arith.constant 0.000000e+00 : f32
      %117 = vector.shape_cast %37 : vector<2x1xf32> to vector<2x1xf32>
      %118 = vector.broadcast %117 : vector<2x1xf32> to vector<2x128xf32>
      %119 = vector.broadcast %cst_62 : f32 to vector<2x128xf32>
      %120 = arith.select %116, %118, %119 : vector<2x128xi1>, vector<2x128xf32>
      %121 = arith.addf %114, %120 : vector<2x128xf32>
      %c2_i32 = arith.constant 2 : i32
      %122 = vector.broadcast %c2_i32 : i32 to vector<2x128xi32>
      %123 = arith.cmpi eq, %108, %122 : vector<2x128xi32>
      %cst_63 = arith.constant 0.000000e+00 : f32
      %124 = vector.shape_cast %107 : vector<2x1xf32> to vector<2x1xf32>
      %125 = vector.broadcast %124 : vector<2x1xf32> to vector<2x128xf32>
      %126 = vector.broadcast %cst_63 : f32 to vector<2x128xf32>
      %127 = arith.select %123, %125, %126 : vector<2x128xi1>, vector<2x128xf32>
      %128 = arith.addf %121, %127 : vector<2x128xf32>
      %c0_64 = arith.constant 0 : index
      %c0_65 = arith.constant 0 : index
      %129 = vector.load %arg22[%c0_64, %c0_65] : memref<2x128xf32, #tpu.memory_space<vmem>>, vector<2x128xf32>
      tpu.vector_store %arg22[%c0_64, %c0_65], %128 {strides = array<i32>} : memref<2x128xf32, #tpu.memory_space<vmem>>, vector<2x128xf32>,
    } else {
    }
    return
  }
  func.func @transform_0(%arg0: i32, %arg1: i32) -> (i32, i32, i32) {
    %c0_i32 = arith.constant 0 : i32
    %c0_i32_0 = arith.constant 0 : i32
    return %arg0, %arg1, %c0_i32 : i32, i32, i32
  }
  func.func @transform_1(%arg0: i32, %arg1: i32) -> (i32, i32) {
    %c0_i32 = arith.constant 0 : i32
    return %arg0, %arg1 : i32, i32
  }
  func.func @transform_2(%arg0: i32, %arg1: i32) -> (i32, i32) {
    %c0_i32 = arith.constant 0 : i32
    %c0_i32_0 = arith.constant 0 : i32
    return %arg0, %c0_i32 : i32, i32
  }
  func.func @transform_3(%arg0: i32, %arg1: i32) -> (i32, i32) {
    %c0_i32 = arith.constant 0 : i32
    %c0_i32_0 = arith.constant 0 : i32
    return %arg0, %c0_i32 : i32, i32
  }
  func.func @transform_4(%arg0: i32, %arg1: i32) -> (i32, i32) {
    %c0_i32 = arith.constant 0 : i32
    %c0_i32_0 = arith.constant 0 : i32
    return %arg0, %c0_i32 : i32, i32
  }
  func.func @transform_5(%arg0: i32, %arg1: i32) -> (i32, i32) {
    %c0_i32 = arith.constant 0 : i32
    %c0_i32_0 = arith.constant 0 : i32
    return %arg0, %c0_i32 : i32, i32
  }
  func.func @transform_6(%arg0: i32, %arg1: i32) -> (i32, i32) {
    %c0_i32 = arith.constant 0 : i32
    %c0_i32_0 = arith.constant 0 : i32
    %c0_i32_1 = arith.constant 0 : i32
    return %c0_i32, %c0_i32_0 : i32, i32
  }
  func.func @transform_7(%arg0: i32, %arg1: i32) -> (i32, i32) {
    %c0_i32 = arith.constant 0 : i32
    %c0_i32_0 = arith.constant 0 : i32
    %c0_i32_1 = arith.constant 0 : i32
    return %c0_i32, %c0_i32_0 : i32, i32
  }
  func.func @transform_8(%arg0: i32, %arg1: i32) -> (i32, i32) {
    %c0_i32 = arith.constant 0 : i32
    %c0_i32_0 = arith.constant 0 : i32
    %c0_i32_1 = arith.constant 0 : i32
    return %c0_i32, %c0_i32_0 : i32, i32
  }
  func.func @transform_9(%arg0: i32, %arg1: i32) -> (i32, i32) {
    %c0_i32 = arith.constant 0 : i32
    %c0_i32_0 = arith.constant 0 : i32
    %c0_i32_1 = arith.constant 0 : i32
    return %c0_i32, %c0_i32_0 : i32, i32
  }
  func.func @transform_10(%arg0: i32, %arg1: i32) -> (i32, i32) {
    %c0_i32 = arith.constant 0 : i32
    %c0_i32_0 = arith.constant 0 : i32
    %c0_i32_1 = arith.constant 0 : i32
    return %c0_i32, %c0_i32_0 : i32, i32
  }
  func.func @transform_11(%arg0: i32, %arg1: i32) -> (i32, i32) {
    %c0_i32 = arith.constant 0 : i32
    %c0_i32_0 = arith.constant 0 : i32
    %c0_i32_1 = arith.constant 0 : i32
    return %c0_i32, %c0_i32_0 : i32, i32
  }
  func.func @transform_12(%arg0: i32, %arg1: i32) -> (i32, i32) {
    %c0_i32 = arith.constant 0 : i32
    %c0_i32_0 = arith.constant 0 : i32
    %c0_i32_1 = arith.constant 0 : i32
    return %c0_i32, %c0_i32_0 : i32, i32
  }
  func.func @transform_13(%arg0: i32, %arg1: i32) -> (i32, i32) {
    %c0_i32 = arith.constant 0 : i32
    %c0_i32_0 = arith.constant 0 : i32
    %c0_i32_1 = arith.constant 0 : i32
    return %c0_i32, %c0_i32_0 : i32, i32
  }
  func.func @transform_14(%arg0: i32, %arg1: i32) -> (i32, i32) {
    %c0_i32 = arith.constant 0 : i32
    %c0_i32_0 = arith.constant 0 : i32
    %c0_i32_1 = arith.constant 0 : i32
    return %c0_i32, %c0_i32_0 : i32, i32
  }
  func.func @transform_15(%arg0: i32, %arg1: i32) -> (i32, i32) {
    %c0_i32 = arith.constant 0 : i32
    %c0_i32_0 = arith.constant 0 : i32
    %c0_i32_1 = arith.constant 0 : i32
    return %c0_i32, %c0_i32_0 : i32, i32
  }
  func.func @transform_16(%arg0: i32, %arg1: i32) -> (i32, i32) {
    %c0_i32 = arith.constant 0 : i32
    %c0_i32_0 = arith.constant 0 : i32
    %c0_i32_1 = arith.constant 0 : i32
    return %c0_i32, %c0_i32_0 : i32, i32
  }
  func.func @transform_17(%arg0: i32, %arg1: i32) -> (i32, i32) {
    %c0_i32 = arith.constant 0 : i32
    %c0_i32_0 = arith.constant 0 : i32
    %c0_i32_1 = arith.constant 0 : i32
    return %c0_i32, %c0_i32_0 : i32, i32
  }
  func.func @transform_18(%arg0: i32, %arg1: i32) -> (i32, i32) {
    %c0_i32 = arith.constant 0 : i32
    %c0_i32_0 = arith.constant 0 : i32
    %c0_i32_1 = arith.constant 0 : i32
    return %c0_i32, %c0_i32_0 : i32, i32
  }
  func.func @transform_19(%arg0: i32, %arg1: i32) -> i32 {
    %c0_i32 = arith.constant 0 : i32
    %c0_i32_0 = arith.constant 0 : i32
    return %c0_i32 : i32
  }
  func.func @transform_20(%arg0: i32, %arg1: i32) -> (i32, i32) {
    %c0_i32 = arith.constant 0 : i32
    %c0_i32_0 = arith.constant 0 : i32
    return %arg0, %c0_i32 : i32, i32
  }
}

</mosaic_0001>

<llo_original>
// kernel: tpu_custom_call.1
$region0: #{tpu_custom_call.1}
  #allocation0 [shape = 'u32[]', space=smem, size = 0x4, offset = 0x4, fixed_abs, tag = 'smem constant byte address 0x4 - core index']
  #allocation1 [shape = 'u32[144,128]{1,0:T(1,128)}', space=vmem, size = 0x12000, scoped, tag = 'internal scratch']
  #allocation2 [shape = 'f32[2,32]{1,0:T(2,128)}', space=vmem, size = 0x400, scoped, tag = 'scratch operand']
  %s0 = inlined_call_operand.hbm [shape: bf16[2,8,32], index: 0, kind: input, shape index: {}]
  %s1 = inlined_call_operand.hbm [shape: bf16[2,8], index: 1, kind: input, shape index: {}]
  %s2 = inlined_call_operand.vmem [shape: f32[2,1], index: 2, kind: input, shape index: {}]
  %s3 = inlined_call_operand.hbm [shape: f32[2,32], index: 3, kind: input, shape index: {}]
  %s4 = inlined_call_operand.hbm [shape: f32[2,32], index: 4, kind: input, shape index: {}]
  %s5 = inlined_call_operand.hbm [shape: f32[2,32], index: 5, kind: input, shape index: {}]
  %s6 = inlined_call_operand.vmem [shape: bf16[32,32], index: 6, kind: input, shape index: {}]
  %s7 = inlined_call_operand.hbm [shape: f32[1,32], index: 7, kind: input, shape index: {}]
  %s8 = inlined_call_operand.hbm [shape: bf16[32,64], index: 8, kind: input, shape index: {}]
  %s9 = inlined_call_operand.hbm [shape: f32[1,64], index: 9, kind: input, shape index: {}]
  %s10 = inlined_call_operand.hbm [shape: bf16[32,32], index: 10, kind: input, shape index: {}]
  %s11 = inlined_call_operand.hbm [shape: f32[1,32], index: 11, kind: input, shape index: {}]
  %s12 = inlined_call_operand.vmem [shape: bf16[32,512], index: 12, kind: input, shape index: {}]
  %s13 = inlined_call_operand.vmem [shape: f32[1,512], index: 13, kind: input, shape index: {}]
  %s14 = inlined_call_operand.hbm [shape: f32[1,32], index: 14, kind: input, shape index: {}]
  %s15 = inlined_call_operand.hbm [shape: f32[1,32], index: 15, kind: input, shape index: {}]
  %s16 = inlined_call_operand.vmem [shape: f32[1,512], index: 16, kind: input, shape index: {}]
  %s17 = inlined_call_operand.vmem [shape: f32[32,4], index: 17, kind: input, shape index: {}]
  %s18 = inlined_call_operand.vmem [shape: f32[4,32], index: 18, kind: input, shape index: {}]
  %s19 = inlined_call_operand.vmem [shape: f32[3], index: 19, kind: input, shape index: {}]
  %s20 = inlined_call_operand.hbm [shape: f32[2,128], index: 20, kind: output, shape index: {}]
  %s21 = sld [smem:[#allocation0]]
  $region150: #{tpu_custom_call.1} parent=0
    _
  %s23 = ssub.s32 1, %s21
  %s24 = scalar_select 0, %s23, %s21
  $region1: #{tpu_custom_call.1} parent=0
    #allocation3 [shape = 'u8[4096]{0}', space=vmem, size = 0x1000, scoped, tag = 'input window, operand 0, single buffered']
    #allocation4 [shape = 's32[1]{0}', space=sflag, size = 0x4, scoped, tag = 'scoped memory for tpu_custom_call.1']
    #allocation5 [shape = 's32[1]{0}', space=sflag, size = 0x4, scoped, tag = 'scoped memory for tpu_custom_call.1']
    #allocation6 [shape = 's32[1]{0}', space=sflag, size = 0x4, scoped, tag = 'scoped memory for tpu_custom_call.1']
    #allocation7 [shape = 'u8[512]{0}', space=vmem, size = 0x400, scoped, tag = 'input window, operand 1, single buffered']
    #allocation8 [shape = 's32[1]{0}', space=sflag, size = 0x4, scoped, tag = 'scoped memory for tpu_custom_call.1']
    #allocation9 [shape = 'u8[1024]{0}', space=vmem, size = 0x400, scoped, tag = 'input window, operand 3, single buffered']
    #allocation10 [shape = 'u8[1024]{0}', space=vmem, size = 0x400, scoped, tag = 'input window, operand 4, single buffered']
    #allocation11 [shape = 's32[1]{0}', space=sflag, size = 0x4, scoped, tag = 'scoped memory for tpu_custom_call.1']
    #allocation12 [shape = 'u8[1024]{0}', space=vmem, size = 0x400, scoped, tag = 'input window, operand 5, single buffered']
    #allocation13 [shape = 'u8[512]{0}', space=vmem, size = 0x400, scoped, tag = 'input window, operand 7, single buffered']
    #allocation14 [shape = 's32[1]{0}', space=sflag, size = 0x4, scoped, tag = 'scoped memory for tpu_custom_call.1']
    #allocation15 [shape = 'u8[8192]{0}', space=vmem, size = 0x2000, scoped, tag = 'input window, operand 8, single buffered']
    #allocation16 [shape = 'u8[512]{0}', space=vmem, size = 0x400, scoped, tag = 'input window, operand 9, single buffered']
    #allocation17 [shape = 's32[1]{0}', space=sflag, size = 0x4, scoped, tag = 'scoped memory for tpu_custom_call.1']
    #allocation18 [shape = 'u8[8192]{0}', space=vmem, size = 0x2000, scoped, tag = 'input window, operand 10, single buffered']
    #allocation19 [shape = 'u8[512]{0}', space=vmem, size = 0x400, scoped, tag = 'input window, operand 11, single buffered']
    #allocation20 [shape = 's32[1]{0}', space=sflag, size = 0x4, scoped, tag = 'scoped memory for tpu_custom_call.1']
    #allocation21 [shape = 'u8[512]{0}', space=vmem, size = 0x400, scoped, tag = 'input window, operand 14, single buffered']
    #allocation22 [shape = 'u8[512]{0}', space=vmem, size = 0x400, scoped, tag = 'input window, operand 15, single buffered']
    #allocation23 [shape = 's32[1]{0}', space=sflag, size = 0x4, scoped, tag = 'scoped memory for tpu_custom_call.1']
    #allocation24 [shape = 'u8[512]{0}', space=smem, size = 0x200, scoped, tag = 'input window, operand 19, single buffered']
    #allocation25 [shape = 'u8[1024]{0}', space=vmem, size = 0x400, scoped, tag = 'output window, operand 0, single buffered']
    %25 = vsyncpa [#allocation4], 0
    %26 = vsyncpa [#allocation8], 0
    %27 = vsyncpa [#allocation11], 0
    %28 = vsyncpa [#allocation14], 0
    %29 = vsyncpa [#allocation17], 0
    %30 = vsyncpa [#allocation20], 0
    %31 = vsyncpa [#allocation23], 0
    %32 = vsyncpa [#allocation6], 0
    %33 = vsyncpa [#allocation5], 0
    // Predicated region
    $region2: #{tpu_custom_call.1} parent=1 // pred_check
      _
    $region3: #{tpu_custom_call.1} parent=1 // pred_check_branch
      %35 = sbr.rel (0) target = $region5
    $region4: #{tpu_custom_call.1} parent=1 // pred_region
      %s37 = ssub.s32 128, 128
      %38 = vsyncadd [#allocation4], %s37
      %s39 = sshll.u32 [#allocation3], 4
      %s40 = int_to_ptr.vmem [resolvable:$true] %s39
      %45 = dma.hbm_to_vmem [thread:$0]  %s0, 128, %s40, [#allocation4], 64, 64, 4
    $region5: #{tpu_custom_call.1} parent=1 // pred_fallthru
      _
    // Predicated region
    $region6: #{tpu_custom_call.1} parent=1 // pred_check
      _
    $region7: #{tpu_custom_call.1} parent=1 // pred_check_branch
      %47 = sbr.rel (0) target = $region9
    $region8: #{tpu_custom_call.1} parent=1 // pred_region
      %s49 = ssub.s32 16, 16
      %50 = vsyncadd [#allocation8], %s49
      %s52 = sshll.u32 [#allocation7], 4
      %s53 = int_to_ptr.vmem [resolvable:$true] %s52
      %55 = dma.hbm_to_vmem [thread:$0]  %s1, 16, %s53, [#allocation8]
    $region9: #{tpu_custom_call.1} parent=1 // pred_fallthru
      _
    // Predicated region
    $region10: #{tpu_custom_call.1} parent=1 // pred_check
      _
    $region11: #{tpu_custom_call.1} parent=1 // pred_check_branch
      %57 = sbr.rel (0) target = $region13
    $region12: #{tpu_custom_call.1} parent=1 // pred_region
      _
    $region13: #{tpu_custom_call.1} parent=1 // pred_fallthru
      _
    // Predicated region
    $region14: #{tpu_custom_call.1} parent=1 // pred_check
      _
    $region15: #{tpu_custom_call.1} parent=1 // pred_check_branch
      %59 = sbr.rel (0) target = $region17
    $region16: #{tpu_custom_call.1} parent=1 // pred_region
      %s61 = ssub.s32 32, 32
      %62 = vsyncadd [#allocation8], %s61
      %s64 = sshll.u32 [#allocation9], 4
      %s65 = int_to_ptr.vmem [resolvable:$true] %s64
      %67 = dma.hbm_to_vmem [thread:$0]  %s3, 32, %s65, [#allocation8]
    $region17: #{tpu_custom_call.1} parent=1 // pred_fallthru
      _
    // Predicated region
    $region18: #{tpu_custom_call.1} parent=1 // pred_check
      _
    $region19: #{tpu_custom_call.1} parent=1 // pred_check_branch
      %69 = sbr.rel (0) target = $region21
    $region20: #{tpu_custom_call.1} parent=1 // pred_region
      %s71 = ssub.s32 32, 32
      %72 = vsyncadd [#allocation11], %s71
      %s74 = sshll.u32 [#allocation10], 4
      %s75 = int_to_ptr.vmem [resolvable:$true] %s74
      %77 = dma.hbm_to_vmem [thread:$0]  %s4, 32, %s75, [#allocation11]
    $region21: #{tpu_custom_call.1} parent=1 // pred_fallthru
      _
    // Predicated region
    $region22: #{tpu_custom_call.1} parent=1 // pred_check
      _
    $region23: #{tpu_custom_call.1} parent=1 // pred_check_branch
      %79 = sbr.rel (0) target = $region25
    $region24: #{tpu_custom_call.1} parent=1 // pred_region
      %s81 = ssub.s32 32, 32
      %82 = vsyncadd [#allocation11], %s81
      %s84 = sshll.u32 [#allocation12], 4
      %s85 = int_to_ptr.vmem [resolvable:$true] %s84
      %87 = dma.hbm_to_vmem [thread:$0]  %s5, 32, %s85, [#allocation11]
    $region25: #{tpu_custom_call.1} parent=1 // pred_fallthru
      _
    // Predicated region
    $region26: #{tpu_custom_call.1} parent=1 // pred_check
      _
    $region27: #{tpu_custom_call.1} parent=1 // pred_check_branch
      %89 = sbr.rel (0) target = $region29
    $region28: #{tpu_custom_call.1} parent=1 // pred_region
      _
    $region29: #{tpu_custom_call.1} parent=1 // pred_fallthru
      _
    // Predicated region
    $region30: #{tpu_custom_call.1} parent=1 // pred_check
      _
    $region31: #{tpu_custom_call.1} parent=1 // pred_check_branch
      %91 = sbr.rel (0) target = $region33
    $region32: #{tpu_custom_call.1} parent=1 // pred_region
      %s93 = ssub.s32 16, 16
      %94 = vsyncadd [#allocation14], %s93
      %s96 = sshll.u32 [#allocation13], 4
      %s97 = int_to_ptr.vmem [resolvable:$true] %s96
      %99 = dma.hbm_to_vmem [thread:$0]  %s7, 16, %s97, [#allocation14]
    $region33: #{tpu_custom_call.1} parent=1 // pred_fallthru
      _
    // Predicated region
    $region34: #{tpu_custom_call.1} parent=1 // pred_check
      _
    $region35: #{tpu_custom_call.1} parent=1 // pred_check_branch
      %101 = sbr.rel (0) target = $region37
    $region36: #{tpu_custom_call.1} parent=1 // pred_region
      %s103 = ssub.s32 256, 256
      %104 = vsyncadd [#allocation14], %s103
      %s105 = sshll.u32 [#allocation15], 4
      %s106 = int_to_ptr.vmem [resolvable:$true] %s105
      %111 = dma.hbm_to_vmem [thread:$0]  %s8, 256, %s106, [#allocation14], 64, 64, 4
    $region37: #{tpu_custom_call.1} parent=1 // pred_fallthru
      _
    // Predicated region
    $region38: #{tpu_custom_call.1} parent=1 // pred_check
      _
    $region39: #{tpu_custom_call.1} parent=1 // pred_check_branch
      %113 = sbr.rel (0) target = $region41
    $region40: #{tpu_custom_call.1} parent=1 // pred_region
      %s115 = ssub.s32 16, 16
      %116 = vsyncadd [#allocation17], %s115
      %s118 = sshll.u32 [#allocation16], 4
      %s119 = int_to_ptr.vmem [resolvable:$true] %s118
      %121 = dma.hbm_to_vmem [thread:$0]  %s9, 16, %s119, [#allocation17]
    $region41: #{tpu_custom_call.1} parent=1 // pred_fallthru
      _
    // Predicated region
    $region42: #{tpu_custom_call.1} parent=1 // pred_check
      _
    $region43: #{tpu_custom_call.1} parent=1 // pred_check_branch
      %123 = sbr.rel (0) target = $region45
    $region44: #{tpu_custom_call.1} parent=1 // pred_region
      %s125 = ssub.s32 256, 256
      %126 = vsyncadd [#allocation17], %s125
      %s127 = sshll.u32 [#allocation18], 4
      %s128 = int_to_ptr.vmem [resolvable:$true] %s127
      %133 = dma.hbm_to_vmem [thread:$0]  %s10, 256, %s128, [#allocation17], 64, 64, 4
    $region45: #{tpu_custom_call.1} parent=1 // pred_fallthru
      _
    // Predicated region
    $region46: #{tpu_custom_call.1} parent=1 // pred_check
      _
    $region47: #{tpu_custom_call.1} parent=1 // pred_check_branch
      %135 = sbr.rel (0) target = $region49
    $region48: #{tpu_custom_call.1} parent=1 // pred_region
      %s137 = ssub.s32 16, 16
      %138 = vsyncadd [#allocation20], %s137
      %s140 = sshll.u32 [#allocation19], 4
      %s141 = int_to_ptr.vmem [resolvable:$true] %s140
      %143 = dma.hbm_to_vmem [thread:$0]  %s11, 16, %s141, [#allocation20]
    $region49: #{tpu_custom_call.1} parent=1 // pred_fallthru
      _
    // Predicated region
    $region50: #{tpu_custom_call.1} parent=1 // pred_check
      _
    $region51: #{tpu_custom_call.1} parent=1 // pred_check_branch
      %145 = sbr.rel (0) target = $region53
    $region52: #{tpu_custom_call.1} parent=1 // pred_region
      _
    $region53: #{tpu_custom_call.1} parent=1 // pred_fallthru
      _
    // Predicated region
    $region54: #{tpu_custom_call.1} parent=1 // pred_check
      _
    $region55: #{tpu_custom_call.1} parent=1 // pred_check_branch
      %147 = sbr.rel (0) target = $region57
    $region56: #{tpu_custom_call.1} parent=1 // pred_region
      _
    $region57: #{tpu_custom_call.1} parent=1 // pred_fallthru
      _
    // Predicated region
    $region58: #{tpu_custom_call.1} parent=1 // pred_check
      _
    $region59: #{tpu_custom_call.1} parent=1 // pred_check_branch
      %149 = sbr.rel (0) target = $region61
    $region60: #{tpu_custom_call.1} parent=1 // pred_region
      %s151 = ssub.s32 16, 16
      %152 = vsyncadd [#allocation20], %s151
      %s154 = sshll.u32 [#allocation21], 4
      %s155 = int_to_ptr.vmem [resolvable:$true] %s154
      %157 = dma.hbm_to_vmem [thread:$0]  %s14, 16, %s155, [#allocation20]
    $region61: #{tpu_custom_call.1} parent=1 // pred_fallthru
      _
    // Predicated region
    $region62: #{tpu_custom_call.1} parent=1 // pred_check
      _
    $region63: #{tpu_custom_call.1} parent=1 // pred_check_branch
      %159 = sbr.rel (0) target = $region65
    $region64: #{tpu_custom_call.1} parent=1 // pred_region
      %s161 = ssub.s32 16, 16
      %162 = vsyncadd [#allocation23], %s161
      %s164 = sshll.u32 [#allocation22], 4
      %s165 = int_to_ptr.vmem [resolvable:$true] %s164
      %167 = dma.hbm_to_vmem [thread:$0]  %s15, 16, %s165, [#allocation23]
    $region65: #{tpu_custom_call.1} parent=1 // pred_fallthru
      _
    // Predicated region
    $region66: #{tpu_custom_call.1} parent=1 // pred_check
      _
    $region67: #{tpu_custom_call.1} parent=1 // pred_check_branch
      %169 = sbr.rel (0) target = $region69
    $region68: #{tpu_custom_call.1} parent=1 // pred_region
      _
    $region69: #{tpu_custom_call.1} parent=1 // pred_fallthru
      _
    // Predicated region
    $region70: #{tpu_custom_call.1} parent=1 // pred_check
      _
    $region71: #{tpu_custom_call.1} parent=1 // pred_check_branch
      %171 = sbr.rel (0) target = $region73
    $region72: #{tpu_custom_call.1} parent=1 // pred_region
      _
    $region73: #{tpu_custom_call.1} parent=1 // pred_fallthru
      _
    // Predicated region
    $region74: #{tpu_custom_call.1} parent=1 // pred_check
      _
    $region75: #{tpu_custom_call.1} parent=1 // pred_check_branch
      %173 = sbr.rel (0) target = $region77
    $region76: #{tpu_custom_call.1} parent=1 // pred_region
      _
    $region77: #{tpu_custom_call.1} parent=1 // pred_fallthru
      _
    // Predicated region
    $region78: #{tpu_custom_call.1} parent=1 // pred_check
      _
    $region79: #{tpu_custom_call.1} parent=1 // pred_check_branch
      %175 = sbr.rel (0) target = $region81
    $region80: #{tpu_custom_call.1} parent=1 // pred_region
      %s177 = ssub.s32 16, 16
      %178 = vsyncadd [#allocation6], %s177
      %s180 = sshll.u32 %s19, 4
      %s181 = int_to_ptr.vmem [resolvable:$true] %s180
      %183 = dma.vmem_to_smem %s181, 16, [#allocation24], [#allocation6]
    $region81: #{tpu_custom_call.1} parent=1 // pred_fallthru
      _
    // Predicated region
    $region82: #{tpu_custom_call.1} parent=1 // pred_check
      _
    $region83: #{tpu_custom_call.1} parent=1 // pred_check_branch
      %185 = sbr.rel (0) target = $region85
    $region84: #{tpu_custom_call.1} parent=1 // pred_region
      %186 = dma.done [#allocation4], 128
    $region85: #{tpu_custom_call.1} parent=1 // pred_fallthru
      _
    // Predicated region
    $region86: #{tpu_custom_call.1} parent=1 // pred_check
      _
    $region87: #{tpu_custom_call.1} parent=1 // pred_check_branch
      %188 = sbr.rel (0) target = $region89
    $region88: #{tpu_custom_call.1} parent=1 // pred_region
      %189 = dma.done [#allocation8], 16
    $region89: #{tpu_custom_call.1} parent=1 // pred_fallthru
      _
    // Predicated region
    $region90: #{tpu_custom_call.1} parent=1 // pred_check
      _
    $region91: #{tpu_custom_call.1} parent=1 // pred_check_branch
      %191 = sbr.rel (0) target = $region93
    $region92: #{tpu_custom_call.1} parent=1 // pred_region
      %192 = dma.done [#allocation8], 32
    $region93: #{tpu_custom_call.1} parent=1 // pred_fallthru
      _
    // Predicated region
    $region94: #{tpu_custom_call.1} parent=1 // pred_check
      _
    $region95: #{tpu_custom_call.1} parent=1 // pred_check_branch
      %194 = sbr.rel (0) target = $region97
    $region96: #{tpu_custom_call.1} parent=1 // pred_region
      %195 = dma.done [#allocation11], 32
    $region97: #{tpu_custom_call.1} parent=1 // pred_fallthru
      _
    // Predicated region
    $region98: #{tpu_custom_call.1} parent=1 // pred_check
      _
    $region99: #{tpu_custom_call.1} parent=1 // pred_check_branch
      %197 = sbr.rel (0) target = $region101
    $region100: #{tpu_custom_call.1} parent=1 // pred_region
      %198 = dma.done [#allocation11], 32
    $region101: #{tpu_custom_call.1} parent=1 // pred_fallthru
      _
    // Predicated region
    $region102: #{tpu_custom_call.1} parent=1 // pred_check
      _
    $region103: #{tpu_custom_call.1} parent=1 // pred_check_branch
      %200 = sbr.rel (0) target = $region105
    $region104: #{tpu_custom_call.1} parent=1 // pred_region
      %201 = dma.done [#allocation14], 16
    $region105: #{tpu_custom_call.1} parent=1 // pred_fallthru
      _
    // Predicated region
    $region106: #{tpu_custom_call.1} parent=1 // pred_check
      _
    $region107: #{tpu_custom_call.1} parent=1 // pred_check_branch
      %203 = sbr.rel (0) target = $region109
    $region108: #{tpu_custom_call.1} parent=1 // pred_region
      %204 = dma.done [#allocation14], 256
    $region109: #{tpu_custom_call.1} parent=1 // pred_fallthru
      _
    // Predicated region
    $region110: #{tpu_custom_call.1} parent=1 // pred_check
      _
    $region111: #{tpu_custom_call.1} parent=1 // pred_check_branch
      %206 = sbr.rel (0) target = $region113
    $region112: #{tpu_custom_call.1} parent=1 // pred_region
      %207 = dma.done [#allocation17], 16
    $region113: #{tpu_custom_call.1} parent=1 // pred_fallthru
      _
    // Predicated region
    $region114: #{tpu_custom_call.1} parent=1 // pred_check
      _
    $region115: #{tpu_custom_call.1} parent=1 // pred_check_branch
      %209 = sbr.rel (0) target = $region117
    $region116: #{tpu_custom_call.1} parent=1 // pred_region
      %210 = dma.done [#allocation17], 256
    $region117: #{tpu_custom_call.1} parent=1 // pred_fallthru
      _
    // Predicated region
    $region118: #{tpu_custom_call.1} parent=1 // pred_check
      _
    $region119: #{tpu_custom_call.1} parent=1 // pred_check_branch
      %212 = sbr.rel (0) target = $region121
    $region120: #{tpu_custom_call.1} parent=1 // pred_region
      %213 = dma.done [#allocation20], 16
    $region121: #{tpu_custom_call.1} parent=1 // pred_fallthru
      _
    // Predicated region
    $region122: #{tpu_custom_call.1} parent=1 // pred_check
      _
    $region123: #{tpu_custom_call.1} parent=1 // pred_check_branch
      %215 = sbr.rel (0) target = $region125
    $region124: #{tpu_custom_call.1} parent=1 // pred_region
      %216 = dma.done [#allocation20], 16
    $region125: #{tpu_custom_call.1} parent=1 // pred_fallthru
      _
    // Predicated region
    $region126: #{tpu_custom_call.1} parent=1 // pred_check
      _
    $region127: #{tpu_custom_call.1} parent=1 // pred_check_branch
      %218 = sbr.rel (0) target = $region129
    $region128: #{tpu_custom_call.1} parent=1 // pred_region
      %219 = dma.done [#allocation23], 16
    $region129: #{tpu_custom_call.1} parent=1 // pred_fallthru
      _
    // Predicated region
    $region130: #{tpu_custom_call.1} parent=1 // pred_check
      _
    $region131: #{tpu_custom_call.1} parent=1 // pred_check_branch
      %221 = sbr.rel (0) target = $region133
    $region132: #{tpu_custom_call.1} parent=1 // pred_region
      %222 = dma.done [#allocation6], 16
    $region133: #{tpu_custom_call.1} parent=1 // pred_fallthru
      _
    %223 = sfence
    %p225 = scmp.eq.s32.totalorder 0, 0
    // Predicated region
    $region134: #{tpu_custom_call.1} parent=1 // pred_check
      %p226 = pneg %p225
    $region135: #{tpu_custom_call.1} parent=1 // pred_check_branch
      %228 = sbr.rel (%p226) target = $region137
    $region136: #{tpu_custom_call.1} parent=1 // pred_region
      %vm229 = vcmask 254976
      %230 = vst.msk [vmem:[#allocation2] sm:$0x3] %vm229, 0.0
    $region137: #{tpu_custom_call.1} parent=1 // pred_fallthru
      _
    %v231 = vld [vmem:[#allocation3] sm:$0xf]
    %v232 = vld [vmem:[#allocation3 + $0x4] sm:$0xf]
    %v233 = vld [vmem:[#allocation7] sm:$0x1]
    %v235 = vpack.i.b16 %v233, %v233
    %v237 = vlaneseq
    %v238 = vshrl.u32 %v237, 7
    %v239 = vsub.s32 0, %v238
    %v240 = vrot.slane %v235, %v239
    %242 = vbcast.lane.c.b16.xlu0 %v240, 256
    %v243 = vpop.permute.xlu0 %242
    %v244 = vshrl.u32 %v233, 16
    %v245 = vpack.i.b16 %v244, %v244
    %v247 = vlaneseq
    %v248 = vshrl.u32 %v247, 7
    %v249 = vsub.s32 0, %v248
    %v250 = vrot.slane %v245, %v249
    %252 = vbcast.lane.c.b16.xlu0 %v250, 256
    %v253 = vpop.permute.xlu0 %252
    %v254 = vmul.bf16 %v231, %v243
    %v255 = vmul.bf16 %v232, %v253
    %v256 = vld [vmem:[#allocation2] sm:$0x3]
    %v257 = vunpack.c.l.bf16 %v254
    %v258 = vunpack.c.l.bf16 %v255
    %vm259 = vcmask 261120
    %v260 = vsel %vm259, %v257, 0.0
    %v261 = vrot.slane %v260, 4
    %v262 = vadd.f32 %v260, %v261
    %v263 = vrot.slane %v262, 2
    %v264 = vadd.f32 %v262, %v263
    %v265 = vrot.slane %v264, 1
    %v266 = vadd.f32 %v264, %v265
    %v267 = vsel %vm259, %v258, 0.0
    %v268 = vrot.slane %v267, 4
    %v269 = vadd.f32 %v267, %v268
    %v270 = vrot.slane %v269, 2
    %v271 = vadd.f32 %v269, %v270
    %v272 = vrot.slane %v271, 1
    %v273 = vadd.f32 %v271, %v272
    %vm276 = vcmask 1041409
    %v277 = vsel %vm276, %v273, %v266
    %v279 = vadd.f32 %v256, %v277
    %vm280 = vcmask 254976
    %281 = vst.msk [vmem:[#allocation2] sm:$0x3] %vm280, %v279
    // Predicated region
    $region138: #{tpu_custom_call.1} parent=1 // pred_check
      %p282 = pneg %p225
    $region139: #{tpu_custom_call.1} parent=1 // pred_check_branch
      %284 = sbr.rel (%p282) target = $region141
    $region140: #{tpu_custom_call.1} parent=1 // pred_region
      %v285 = vld [vmem:[#allocation2] sm:$0x3]
      %v286 = vld [vmem:[%s2] sm:$0x3]
      %288 = vset.pattern.permute.xlu0 0
      %289 = vperm.xlu0 %288, %v286
      %v290 = vpop.permute.xlu0 %289
      %v292 = vmul.f32 %v285, %v290
      %v293 = vld [vmem:[#allocation9] sm:$0x3]
      %s294 = sld [smem:[#allocation24]]
      %s295 = sld [smem:[#allocation24 + $0x1]]
      %s296 = sld [smem:[#allocation24 + $0x2]]
      %v297 = vld [vmem:[#allocation21] sm:$0x1]
      %v299 = vlaneseq
      %v300 = vshrl.u32 %v299, 7
      %v301 = vsub.s32 0, %v300
      %v302 = vrot.slane %v297, %v301
      %v304 = vmul.f32 %v293, %v302
      %v305 = vsel %vm280, %v304, 0.0
      %306 = vadd.xlane.f32.xlu0 %v305
      %v307 = vpop.xlane.xlu0 %306
      %v308 = vstv %s294
      %v309 = vadd.f32 %v307, %v308
      %v310 = vld [vmem:[#allocation22] sm:$0x1]
      %v312 = vlaneseq
      %v313 = vshrl.u32 %v312, 7
      %v314 = vsub.s32 0, %v313
      %v315 = vrot.slane %v310, %v314
      %v317 = vmul.f32 %v292, %v315
      %v318 = vsel %vm280, %v317, 0.0
      %319 = vadd.xlane.f32.xlu0 %v318
      %v320 = vpop.xlane.xlu0 %319
      %v321 = vstv %s295
      %v322 = vadd.f32 %v320, %v321
      %v323 = vld [vmem:[#allocation10] sm:$0x3]
      %v324 = vld [vmem:[#allocation12] sm:$0x3]
      %v325 = vadd.f32 %v323, %v324
      %v326 = vmul.f32 %v325, 0.5
      %v327 = vpack.c.bf16 %v326, %v326
      %v328 = vld [vmem:[%s6] sm:$0xf]
      %v329 = vld [vmem:[%s6 + $0x4] sm:$0xf]
      %v330 = vld [vmem:[%s6 + $0x8] sm:$0xf]
      %v331 = vld [vmem:[%s6 + $0xc] sm:$0xf]
      %v332 = vld [vmem:[#allocation13] sm:$0x1]
      %v334 = vlaneseq
      %v335 = vshrl.u32 %v334, 7
      %v336 = vsub.s32 0, %v335
      %v337 = vrot.slane %v332, %v336
      %v343 = vunpack.c.l.b16 %v328
      %v344 = vunpack.c.l.b16 %v329
      %v345 = vunpack.c.l.b16 %v330
      %v346 = vunpack.c.l.b16 %v331
      %v347 = vpack.c.b16 %v344, %v343
      %v348 = vpack.c.b16 %v346, %v345
      %v352 = vsel %vm259, %v327, 0
      %354 = vmatprep.subr.bf16.mxu0 0
      %355 = vmatpush1.bf16.msra.mxu0 %v347
      %356 = vmatprep.subr.bf16.mxu0 0
      %357 = vmatpush1.bf16.msra.mxu0 %v348
      %358 = vmatprep.subr.bf16.mxu0 0
      %359 = vmatpush1.bf16.msra.mxu0 0
      %360 = vmatprep.subr.bf16.mxu0 0
      %361 = vmatpush1.bf16.msra.mxu0 0
      %362 = vmatprep.subr.bf16.mxu0 0
      %363 = vmatpush1.bf16.msra.mxu0 0
      %364 = vmatprep.subr.bf16.mxu0 0
      %365 = vmatpush1.bf16.msra.mxu0 0
      %366 = vmatprep.subr.bf16.mxu0 0
      %367 = vmatpush1.bf16.msra.mxu0 0
      %368 = vmatprep.subr.bf16.mxu0 0
      %369 = vmatpush1.bf16.msra.mxu0 0
      %370 = vmatprep.subr.bf16.mxu0 0
      %371 = vmatpush1.bf16.msra.mxu0 0
      %372 = vmatprep.subr.bf16.mxu0 0
      %373 = vmatpush1.bf16.msra.mxu0 0
      %374 = vmatprep.subr.bf16.mxu0 0
      %375 = vmatpush1.bf16.msra.mxu0 0
      %376 = vmatprep.subr.bf16.mxu0 0
      %377 = vmatpush1.bf16.msra.mxu0 0
      %378 = vmatprep.subr.bf16.mxu0 0
      %379 = vmatpush1.bf16.msra.mxu0 0
      %380 = vmatprep.subr.bf16.mxu0 0
      %381 = vmatpush1.bf16.msra.mxu0 0
      %382 = vmatprep.subr.bf16.mxu0 0
      %383 = vmatpush1.bf16.msra.mxu0 0
      %384 = vmatprep.subr.bf16.mxu0 0
      %385 = vmatpush1.bf16.msra.mxu0 0
      %386 = vmatprep.mubr.bf16.mxu0 0
      %387 = vmatmul.mubr.bf16.gmra.mrb[0].mxu0 %v352
      %v388 = vpop.f32.mrb[0].mxu0
      %v389 = vadd.f32 %v337, %v388
      %v390 = vpop.f32.mrb[0].mxu0
      %v391 = vpop.f32.mrb[0].mxu0
      %v392 = vpop.f32.mrb[0].mxu0
      %393 = vdwg.mxu0
      %v395 = vrot.slane %v324, 6
      %vm397 = vcmask 1041408
      %v398 = vsel %vm397, %v323, %v395
      %v399 = vpack.c.bf16 %v398, %v398
      %v400 = vld [vmem:[#allocation15] sm:$0xf]
      %v401 = vld [vmem:[#allocation15 + $0x4] sm:$0xf]
      %v402 = vld [vmem:[#allocation15 + $0x8] sm:$0xf]
      %v403 = vld [vmem:[#allocation15 + $0xc] sm:$0xf]
      %v404 = vld [vmem:[#allocation16] sm:$0x1]
      %v406 = vlaneseq
      %v407 = vshrl.u32 %v406, 7
      %v408 = vsub.s32 0, %v407
      %v409 = vrot.slane %v404, %v408
      %v415 = vunpack.c.l.b16 %v400
      %v416 = vunpack.c.l.b16 %v401
      %v417 = vunpack.c.l.b16 %v402
      %v418 = vunpack.c.l.b16 %v403
      %v419 = vpack.c.b16 %v416, %v415
      %v420 = vpack.c.b16 %v418, %v417
      %v424 = vsel %vm259, %v399, 0
      %426 = vmatprep.subr.bf16.mxu0 0
      %427 = vmatpush1.bf16.msra.mxu0 %v419
      %428 = vmatprep.subr.bf16.mxu0 0
      %429 = vmatpush1.bf16.msra.mxu0 %v420
      %430 = vmatprep.subr.bf16.mxu0 0
      %431 = vmatpush1.bf16.msra.mxu0 0
      %432 = vmatprep.subr.bf16.mxu0 0
      %433 = vmatpush1.bf16.msra.mxu0 0
      %434 = vmatprep.subr.bf16.mxu0 0
      %435 = vmatpush1.bf16.msra.mxu0 0
      %436 = vmatprep.subr.bf16.mxu0 0
      %437 = vmatpush1.bf16.msra.mxu0 0
      %438 = vmatprep.subr.bf16.mxu0 0
      %439 = vmatpush1.bf16.msra.mxu0 0
      %440 = vmatprep.subr.bf16.mxu0 0
      %441 = vmatpush1.bf16.msra.mxu0 0
      %442 = vmatprep.subr.bf16.mxu0 0
      %443 = vmatpush1.bf16.msra.mxu0 0
      %444 = vmatprep.subr.bf16.mxu0 0
      %445 = vmatpush1.bf16.msra.mxu0 0
      %446 = vmatprep.subr.bf16.mxu0 0
      %447 = vmatpush1.bf16.msra.mxu0 0
      %448 = vmatprep.subr.bf16.mxu0 0
      %449 = vmatpush1.bf16.msra.mxu0 0
      %450 = vmatprep.subr.bf16.mxu0 0
      %451 = vmatpush1.bf16.msra.mxu0 0
      %452 = vmatprep.subr.bf16.mxu0 0
      %453 = vmatpush1.bf16.msra.mxu0 0
      %454 = vmatprep.subr.bf16.mxu0 0
      %455 = vmatpush1.bf16.msra.mxu0 0
      %456 = vmatprep.subr.bf16.mxu0 0
      %457 = vmatpush1.bf16.msra.mxu0 0
      %458 = vmatprep.mubr.bf16.mxu0 0
      %459 = vmatmul.mubr.bf16.gmra.mrb[0].mxu0 %v424
      %v460 = vpop.f32.mrb[0].mxu0
      %v461 = vadd.f32 %v409, %v460
      %v462 = vpop.f32.mrb[0].mxu0
      %v463 = vpop.f32.mrb[0].mxu0
      %v464 = vpop.f32.mrb[0].mxu0
      %465 = vdwg.mxu0
      %v466 = vmul.f32 %v389, %v461
      %v468 = vrot.slane %v461, 2
      %v470 = vmul.f32 %v389, %v468
      %v472 = vrot.slane %v470, 6
      %v474 = vsel %vm397, %v466, %v472
      %v475 = vld [vmem:[%s17] sm:$0xff]
      %v476 = vld [vmem:[%s17 + $0x8] sm:$0xff]
      %v477 = vld [vmem:[%s17 + $0x10] sm:$0xff]
      %v478 = vld [vmem:[%s17 + $0x18] sm:$0xff]
      %v480 = vsel %vm259, %v474, 0
      %482 = vmatprep.subr.mxu0 0.0
      %483 = vmatpush1.msra.mxu0 %v475
      %484 = vmatprep.subr.mxu0 0.0
      %485 = vmatpush1.msra.mxu0 %v476
      %486 = vmatprep.subr.mxu0 0.0
      %487 = vmatpush1.msra.mxu0 %v477
      %488 = vmatprep.subr.mxu0 0.0
      %489 = vmatpush1.msra.mxu0 %v478
      %490 = vmatprep.subr.mxu0 0.0
      %491 = vmatpush1.msra.mxu0 0.0
      %492 = vmatprep.subr.mxu0 0.0
      %493 = vmatpush1.msra.mxu0 0.0
      %494 = vmatprep.subr.mxu0 0.0
      %495 = vmatpush1.msra.mxu0 0.0
      %496 = vmatprep.subr.mxu0 0.0
      %497 = vmatpush1.msra.mxu0 0.0
      %498 = vmatprep.subr.mxu0 0.0
      %499 = vmatpush1.msra.mxu0 0.0
      %500 = vmatprep.subr.mxu0 0.0
      %501 = vmatpush1.msra.mxu0 0.0
      %502 = vmatprep.subr.mxu0 0.0
      %503 = vmatpush1.msra.mxu0 0.0
      %504 = vmatprep.subr.mxu0 0.0
      %505 = vmatpush1.msra.mxu0 0.0
      %506 = vmatprep.subr.mxu0 0.0
      %507 = vmatpush1.msra.mxu0 0.0
      %508 = vmatprep.subr.mxu0 0.0
      %509 = vmatpush1.msra.mxu0 0.0
      %510 = vmatprep.subr.mxu0 0.0
      %511 = vmatpush1.msra.mxu0 0.0
      %512 = vmatprep.subr.mxu0 0.0
      %513 = vmatpush1.msra.mxu0 0.0
      %514 = vmatprep.subr.mxu0 0.0
      %515 = vmatpush1.msra.mxu0 0.0
      %516 = vmatprep.subr.mxu0 0.0
      %517 = vmatpush1.msra.mxu0 0.0
      %518 = vmatprep.subr.mxu0 0.0
      %519 = vmatpush1.msra.mxu0 0.0
      %520 = vmatprep.subr.mxu0 0.0
      %521 = vmatpush1.msra.mxu0 0.0
      %522 = vmatprep.subr.mxu0 0.0
      %523 = vmatpush1.msra.mxu0 0.0
      %524 = vmatprep.subr.mxu0 0.0
      %525 = vmatpush1.msra.mxu0 0.0
      %526 = vmatprep.subr.mxu0 0.0
      %527 = vmatpush1.msra.mxu0 0.0
      %528 = vmatprep.subr.mxu0 0.0
      %529 = vmatpush1.msra.mxu0 0.0
      %530 = vmatprep.subr.mxu0 0.0
      %531 = vmatpush1.msra.mxu0 0.0
      %532 = vmatprep.subr.mxu0 0.0
      %533 = vmatpush1.msra.mxu0 0.0
      %534 = vmatprep.subr.mxu0 0.0
      %535 = vmatpush1.msra.mxu0 0.0
      %536 = vmatprep.subr.mxu0 0.0
      %537 = vmatpush1.msra.mxu0 0.0
      %538 = vmatprep.subr.mxu0 0.0
      %539 = vmatpush1.msra.mxu0 0.0
      %540 = vmatprep.subr.mxu0 0.0
      %541 = vmatpush1.msra.mxu0 0.0
      %542 = vmatprep.subr.mxu0 0.0
      %543 = vmatpush1.msra.mxu0 0.0
      %544 = vmatprep.subr.mxu0 0.0
      %545 = vmatpush1.msra.mxu0 0.0
      %546 = vmatprep.mubr.f32.mxu0 0.0
      %547 = vmatmul.mubr.f32.gmra.mrb[0].mxu0 %v480
      %v548 = vpop.f32.mrb[0].mxu0
      %v549 = vadd.f32 0.0, %v548
      %v550 = vpop.f32.mrb[0].mxu0
      %551 = vdwg.mxu0
      %v552 = vmul.f32 %v549, 0.35355338
      %v554 = vrot.slane %v552, 2
      %v556 = vmax.f32 %v552, %v554
      %v557 = vsub.f32 %v552, %v556
      %v558 = vmul.f32 %v557, 1.442695
      %v559 = vpow.pop %v558
      %v561 = vrot.slane %v556, 6
      %v563 = vsub.f32 %v552, %v561
      %v564 = vmul.f32 %v563, 1.442695
      %v565 = vpow.pop %v564
      %v567 = vrot.slane %v565, 2
      %v569 = vadd.f32 %v559, %v567
      %v570 = vrcp.pop %v569
      %v571 = vmul.f32 %v559, %v570
      %v573 = vrot.slane %v570, 6
      %v575 = vmul.f32 %v565, %v573
      %v576 = vsel %vm397, %v571, %v575
      %v577 = vld [vmem:[%s18] sm:$0xf]
      %vm578 = vcmask 31744
      %v580 = vsel %vm578, %v576, 0
      %vm582 = vcmask 1043456
      %v584 = vsel %vm582, %v577, 0
      %586 = vmatprep.subr.mxu0 0.0
      %587 = vmatpush1.msra.mxu0 %v584
      %588 = vmatprep.subr.mxu0 0.0
      %589 = vmatpush1.msra.mxu0 0.0
      %590 = vmatprep.subr.mxu0 0.0
      %591 = vmatpush1.msra.mxu0 0.0
      %592 = vmatprep.subr.mxu0 0.0
      %593 = vmatpush1.msra.mxu0 0.0
      %594 = vmatprep.subr.mxu0 0.0
      %595 = vmatpush1.msra.mxu0 0.0
      %596 = vmatprep.subr.mxu0 0.0
      %597 = vmatpush1.msra.mxu0 0.0
      %598 = vmatprep.subr.mxu0 0.0
      %599 = vmatpush1.msra.mxu0 0.0
      %600 = vmatprep.subr.mxu0 0.0
      %601 = vmatpush1.msra.mxu0 0.0
      %602 = vmatprep.subr.mxu0 0.0
      %603 = vmatpush1.msra.mxu0 0.0
      %604 = vmatprep.subr.mxu0 0.0
      %605 = vmatpush1.msra.mxu0 0.0
      %606 = vmatprep.subr.mxu0 0.0
      %607 = vmatpush1.msra.mxu0 0.0
      %608 = vmatprep.subr.mxu0 0.0
      %609 = vmatpush1.msra.mxu0 0.0
      %610 = vmatprep.subr.mxu0 0.0
      %611 = vmatpush1.msra.mxu0 0.0
      %612 = vmatprep.subr.mxu0 0.0
      %613 = vmatpush1.msra.mxu0 0.0
      %614 = vmatprep.subr.mxu0 0.0
      %615 = vmatpush1.msra.mxu0 0.0
      %616 = vmatprep.subr.mxu0 0.0
      %617 = vmatpush1.msra.mxu0 0.0
      %618 = vmatprep.subr.mxu0 0.0
      %619 = vmatpush1.msra.mxu0 0.0
      %620 = vmatprep.subr.mxu0 0.0
      %621 = vmatpush1.msra.mxu0 0.0
      %622 = vmatprep.subr.mxu0 0.0
      %623 = vmatpush1.msra.mxu0 0.0
      %624 = vmatprep.subr.mxu0 0.0
      %625 = vmatpush1.msra.mxu0 0.0
      %626 = vmatprep.subr.mxu0 0.0
      %627 = vmatpush1.msra.mxu0 0.0
      %628 = vmatprep.subr.mxu0 0.0
      %629 = vmatpush1.msra.mxu0 0.0
      %630 = vmatprep.subr.mxu0 0.0
      %631 = vmatpush1.msra.mxu0 0.0
      %632 = vmatprep.subr.mxu0 0.0
      %633 = vmatpush1.msra.mxu0 0.0
      %634 = vmatprep.subr.mxu0 0.0
      %635 = vmatpush1.msra.mxu0 0.0
      %636 = vmatprep.subr.mxu0 0.0
      %637 = vmatpush1.msra.mxu0 0.0
      %638 = vmatprep.subr.mxu0 0.0
      %639 = vmatpush1.msra.mxu0 0.0
      %640 = vmatprep.subr.mxu0 0.0
      %641 = vmatpush1.msra.mxu0 0.0
      %642 = vmatprep.subr.mxu0 0.0
      %643 = vmatpush1.msra.mxu0 0.0
      %644 = vmatprep.subr.mxu0 0.0
      %645 = vmatpush1.msra.mxu0 0.0
      %646 = vmatprep.subr.mxu0 0.0
      %647 = vmatpush1.msra.mxu0 0.0
      %648 = vmatprep.subr.mxu0 0.0
      %649 = vmatpush1.msra.mxu0 0.0
      %650 = vmatprep.mubr.f32.mxu0 0.0
      %651 = vmatmul.mubr.f32.gmra.mrb[0].mxu0 %v580
      %v652 = vpop.f32.mrb[0].mxu0
      %v653 = vadd.f32 0.0, %v652
      %v654 = vpop.f32.mrb[0].mxu0
      %655 = vdwg.mxu0
      %656 = vrot.lane.b32.xlu0 %v461, 96
      %v657 = vpop.permute.xlu0 %656
      %v659 = vmul.f32 %v653, %v657
      %v661 = vrot.slane %v659, 2
      %v663 = vadd.f32 %v659, %v661
      %v664 = vpack.c.bf16 %v663, %v663
      %v665 = vld [vmem:[#allocation18] sm:$0xf]
      %v666 = vld [vmem:[#allocation18 + $0x4] sm:$0xf]
      %v667 = vld [vmem:[#allocation18 + $0x8] sm:$0xf]
      %v668 = vld [vmem:[#allocation18 + $0xc] sm:$0xf]
      %v669 = vld [vmem:[#allocation19] sm:$0x1]
      %v671 = vlaneseq
      %v672 = vshrl.u32 %v671, 7
      %v673 = vsub.s32 0, %v672
      %v674 = vrot.slane %v669, %v673
      %v680 = vunpack.c.l.b16 %v665
      %v681 = vunpack.c.l.b16 %v666
      %v682 = vunpack.c.l.b16 %v667
      %v683 = vunpack.c.l.b16 %v668
      %v684 = vpack.c.b16 %v681, %v680
      %v685 = vpack.c.b16 %v683, %v682
      %v689 = vsel %vm259, %v664, 0
      %691 = vmatprep.subr.bf16.mxu0 0
      %692 = vmatpush1.bf16.msra.mxu0 %v684
      %693 = vmatprep.subr.bf16.mxu0 0
      %694 = vmatpush1.bf16.msra.mxu0 %v685
      %695 = vmatprep.subr.bf16.mxu0 0
      %696 = vmatpush1.bf16.msra.mxu0 0
      %697 = vmatprep.subr.bf16.mxu0 0
      %698 = vmatpush1.bf16.msra.mxu0 0
      %699 = vmatprep.subr.bf16.mxu0 0
      %700 = vmatpush1.bf16.msra.mxu0 0
      %701 = vmatprep.subr.bf16.mxu0 0
      %702 = vmatpush1.bf16.msra.mxu0 0
      %703 = vmatprep.subr.bf16.mxu0 0
      %704 = vmatpush1.bf16.msra.mxu0 0
      %705 = vmatprep.subr.bf16.mxu0 0
      %706 = vmatpush1.bf16.msra.mxu0 0
      %707 = vmatprep.subr.bf16.mxu0 0
      %708 = vmatpush1.bf16.msra.mxu0 0
      %709 = vmatprep.subr.bf16.mxu0 0
      %710 = vmatpush1.bf16.msra.mxu0 0
      %711 = vmatprep.subr.bf16.mxu0 0
      %712 = vmatpush1.bf16.msra.mxu0 0
      %713 = vmatprep.subr.bf16.mxu0 0
      %714 = vmatpush1.bf16.msra.mxu0 0
      %715 = vmatprep.subr.bf16.mxu0 0
      %716 = vmatpush1.bf16.msra.mxu0 0
      %717 = vmatprep.subr.bf16.mxu0 0
      %718 = vmatpush1.bf16.msra.mxu0 0
      %719 = vmatprep.subr.bf16.mxu0 0
      %720 = vmatpush1.bf16.msra.mxu0 0
      %721 = vmatprep.subr.bf16.mxu0 0
      %722 = vmatpush1.bf16.msra.mxu0 0
      %723 = vmatprep.mubr.bf16.mxu0 0
      %724 = vmatmul.mubr.bf16.gmra.mrb[0].mxu0 %v689
      %v725 = vpop.f32.mrb[0].mxu0
      %v726 = vadd.f32 %v674, %v725
      %v727 = vpop.f32.mrb[0].mxu0
      %v728 = vpop.f32.mrb[0].mxu0
      %v729 = vpop.f32.mrb[0].mxu0
      %730 = vdwg.mxu0
      %v731 = vadd.f32 %v726, %v326
      %v732 = vpack.c.bf16 %v731, %v731
      %v733 = vld [vmem:[%s12] sm:$0xff]
      %v734 = vld [vmem:[%s12 + $0x8] sm:$0xff]
      %v735 = vld [vmem:[%s12 + $0x10] sm:$0xff]
      %v736 = vld [vmem:[%s12 + $0x18] sm:$0xff]
      %v737 = vld [vmem:[%s12 + $0x20] sm:$0xff]
      %v738 = vld [vmem:[%s12 + $0x28] sm:$0xff]
      %v739 = vld [vmem:[%s12 + $0x30] sm:$0xff]
      %v740 = vld [vmem:[%s12 + $0x38] sm:$0xff]
      %v741 = vld [vmem:[%s13] sm:$0xf]
      %v743 = vlaneseq
      %v744 = vshrl.u32 %v743, 7
      %v745 = vsub.s32 0, %v744
      %v746 = vrot.slane %v741, %v745
      %v747 = vlaneseq
      %v748 = vshrl.u32 %v747, 7
      %v749 = vsub.s32 1, %v748
      %v750 = vrot.slane %v741, %v749
      %v751 = vlaneseq
      %v752 = vshrl.u32 %v751, 7
      %v753 = vsub.s32 2, %v752
      %v754 = vrot.slane %v741, %v753
      %v755 = vlaneseq
      %v756 = vshrl.u32 %v755, 7
      %v757 = vsub.s32 3, %v756
      %v758 = vrot.slane %v741, %v757
      %v771 = vunpack.c.l.b16 %v733
      %v772 = vunpack.c.h.b16 %v733
      %v773 = vunpack.c.l.b16 %v734
      %v774 = vunpack.c.h.b16 %v734
      %v775 = vunpack.c.l.b16 %v735
      %v776 = vunpack.c.h.b16 %v735
      %v777 = vunpack.c.l.b16 %v736
      %v778 = vunpack.c.h.b16 %v736
      %v779 = vunpack.c.l.b16 %v737
      %v780 = vunpack.c.h.b16 %v737
      %v781 = vunpack.c.l.b16 %v738
      %v782 = vunpack.c.h.b16 %v738
      %v783 = vunpack.c.l.b16 %v739
      %v784 = vunpack.c.h.b16 %v739
      %v785 = vunpack.c.l.b16 %v740
      %v786 = vunpack.c.h.b16 %v740
      %v787 = vpack.c.b16 %v775, %v771
      %v788 = vpack.c.b16 %v776, %v772
      %v789 = vpack.c.b16 %v777, %v773
      %v790 = vpack.c.b16 %v778, %v774
      %v791 = vpack.c.b16 %v783, %v779
      %v792 = vpack.c.b16 %v784, %v780
      %v793 = vpack.c.b16 %v785, %v781
      %v794 = vpack.c.b16 %v786, %v782
      %v804 = vsel %vm259, %v732, 0
      %806 = vmatprep.subr.bf16.mxu0 %v788
      %807 = vmatpush1.bf16.msra.mxu0 %v787
      %808 = vmatprep.subr.bf16.mxu0 %v792
      %809 = vmatpush1.bf16.msra.mxu0 %v791
      %810 = vmatprep.subr.bf16.mxu0 0
      %811 = vmatpush1.bf16.msra.mxu0 0
      %812 = vmatprep.subr.bf16.mxu0 0
      %813 = vmatpush1.bf16.msra.mxu0 0
      %814 = vmatprep.subr.bf16.mxu0 0
      %815 = vmatpush1.bf16.msra.mxu0 0
      %816 = vmatprep.subr.bf16.mxu0 0
      %817 = vmatpush1.bf16.msra.mxu0 0
      %818 = vmatprep.subr.bf16.mxu0 0
      %819 = vmatpush1.bf16.msra.mxu0 0
      %820 = vmatprep.subr.bf16.mxu0 0
      %821 = vmatpush1.bf16.msra.mxu0 0
      %822 = vmatprep.subr.bf16.mxu0 0
      %823 = vmatpush1.bf16.msra.mxu0 0
      %824 = vmatprep.subr.bf16.mxu0 0
      %825 = vmatpush1.bf16.msra.mxu0 0
      %826 = vmatprep.subr.bf16.mxu0 0
      %827 = vmatpush1.bf16.msra.mxu0 0
      %828 = vmatprep.subr.bf16.mxu0 0
      %829 = vmatpush1.bf16.msra.mxu0 0
      %830 = vmatprep.subr.bf16.mxu0 0
      %831 = vmatpush1.bf16.msra.mxu0 0
      %832 = vmatprep.subr.bf16.mxu0 0
      %833 = vmatpush1.bf16.msra.mxu0 0
      %834 = vmatprep.subr.bf16.mxu0 0
      %835 = vmatpush1.bf16.msra.mxu0 0
      %836 = vmatprep.subr.bf16.mxu0 0
      %837 = vmatpush1.bf16.msra.mxu0 0
      %838 = vmatprep.mubr.bf16.mxu0 0
      %839 = vmatmul.mubr.bf16.gmra.mrb[0].mxu0 %v804
      %v840 = vpop.f32.mrb[0].mxu0
      %v841 = vadd.f32 %v746, %v840
      %v842 = vpop.f32.mrb[0].mxu0
      %v843 = vadd.f32 %v750, %v842
      %v844 = vpop.f32.mrb[0].mxu0
      %v845 = vpop.f32.mrb[0].mxu0
      %846 = vdwg.mxu0
      %847 = vmatprep.subr.bf16.mxu0 %v790
      %848 = vmatpush1.bf16.msra.mxu0 %v789
      %849 = vmatprep.subr.bf16.mxu0 %v794
      %850 = vmatpush1.bf16.msra.mxu0 %v793
      %851 = vmatprep.subr.bf16.mxu0 0
      %852 = vmatpush1.bf16.msra.mxu0 0
      %853 = vmatprep.subr.bf16.mxu0 0
      %854 = vmatpush1.bf16.msra.mxu0 0
      %855 = vmatprep.subr.bf16.mxu0 0
      %856 = vmatpush1.bf16.msra.mxu0 0
      %857 = vmatprep.subr.bf16.mxu0 0
      %858 = vmatpush1.bf16.msra.mxu0 0
      %859 = vmatprep.subr.bf16.mxu0 0
      %860 = vmatpush1.bf16.msra.mxu0 0
      %861 = vmatprep.subr.bf16.mxu0 0
      %862 = vmatpush1.bf16.msra.mxu0 0
      %863 = vmatprep.subr.bf16.mxu0 0
      %864 = vmatpush1.bf16.msra.mxu0 0
      %865 = vmatprep.subr.bf16.mxu0 0
      %866 = vmatpush1.bf16.msra.mxu0 0
      %867 = vmatprep.subr.bf16.mxu0 0
      %868 = vmatpush1.bf16.msra.mxu0 0
      %869 = vmatprep.subr.bf16.mxu0 0
      %870 = vmatpush1.bf16.msra.mxu0 0
      %871 = vmatprep.subr.bf16.mxu0 0
      %872 = vmatpush1.bf16.msra.mxu0 0
      %873 = vmatprep.subr.bf16.mxu0 0
      %874 = vmatpush1.bf16.msra.mxu0 0
      %875 = vmatprep.subr.bf16.mxu0 0
      %876 = vmatpush1.bf16.msra.mxu0 0
      %877 = vmatprep.subr.bf16.mxu0 0
      %878 = vmatpush1.bf16.msra.mxu0 0
      %879 = vmatprep.mubr.bf16.mxu0 0
      %880 = vmatmul.mubr.bf16.gmra.mrb[0].mxu0 %v804
      %v881 = vpop.f32.mrb[0].mxu0
      %v882 = vadd.f32 %v754, %v881
      %v883 = vpop.f32.mrb[0].mxu0
      %v884 = vadd.f32 %v758, %v883
      %v885 = vpop.f32.mrb[0].mxu0
      %v886 = vpop.f32.mrb[0].mxu0
      %887 = vdwg.mxu0
      %v888 = vmax.f32 %v841, 0.0
      %v889 = vmax.f32 %v843, 0.0
      %v890 = vmax.f32 %v882, 0.0
      %v891 = vmax.f32 %v884, 0.0
      %v892 = vld [vmem:[%s16] sm:$0xf]
      %v894 = vlaneseq
      %v895 = vshrl.u32 %v894, 7
      %v896 = vsub.s32 0, %v895
      %v897 = vrot.slane %v892, %v896
      %v898 = vlaneseq
      %v899 = vshrl.u32 %v898, 7
      %v900 = vsub.s32 1, %v899
      %v901 = vrot.slane %v892, %v900
      %v902 = vlaneseq
      %v903 = vshrl.u32 %v902, 7
      %v904 = vsub.s32 2, %v903
      %v905 = vrot.slane %v892, %v904
      %v906 = vlaneseq
      %v907 = vshrl.u32 %v906, 7
      %v908 = vsub.s32 3, %v907
      %v909 = vrot.slane %v892, %v908
      %v914 = vmul.f32 %v888, %v897
      %v915 = vmul.f32 %v889, %v901
      %v916 = vmul.f32 %v890, %v905
      %v917 = vmul.f32 %v891, %v909
      %v918 = vsel %vm397, %v914, 0.0
      %v919 = vsel %vm397, %v915, 0.0
      %v920 = vadd.f32 %v918, %v919
      %v921 = vsel %vm397, %v916, 0.0
      %v922 = vadd.f32 %v920, %v921
      %v923 = vsel %vm397, %v917, 0.0
      %v924 = vadd.f32 %v922, %v923
      %925 = vadd.xlane.f32.xlu0 %v924
      %v926 = vpop.xlane.xlu0 %925
      %v927 = vstv %s296
      %v928 = vadd.f32 %v926, %v927
      %v929 = vlaneseq
      %v930 = vand.u32 %v929, 127
      %vm931 = vcmp.eq.s32.totalorder %v930, 0
      %v932 = vsel %vm931, %v309, 0.0
      %vm933 = vcmp.eq.s32.totalorder %v930, 1
      %v934 = vsel %vm933, %v322, 0.0
      %v935 = vadd.f32 %v932, %v934
      %vm936 = vcmp.eq.s32.totalorder %v930, 2
      %v937 = vsel %vm936, %v928, 0.0
      %v938 = vadd.f32 %v935, %v937
      %939 = vst [vmem:[#allocation25] sm:$0x3] %v938
    $region141: #{tpu_custom_call.1} parent=1 // pred_fallthru
      _
    // Predicated region
    $region142: #{tpu_custom_call.1} parent=1 // pred_check
      _
    $region143: #{tpu_custom_call.1} parent=1 // pred_check_branch
      %941 = sbr.rel (0) target = $region145
    $region144: #{tpu_custom_call.1} parent=1 // pred_region
      %s943 = ssub.s32 32, 32
      %944 = vsyncadd [#allocation5], %s943
      %s946 = sshll.u32 [#allocation25], 4
      %s947 = int_to_ptr.vmem [resolvable:$true] %s946
      %949 = dma.vmem_to_hbm [thread:$0]  %s947, 32, %s20, [#allocation5]
    $region145: #{tpu_custom_call.1} parent=1 // pred_fallthru
      _
    // Predicated region
    $region146: #{tpu_custom_call.1} parent=1 // pred_check
      _
    $region147: #{tpu_custom_call.1} parent=1 // pred_check_branch
      %951 = sbr.rel (0) target = $region149
    $region148: #{tpu_custom_call.1} parent=1 // pred_region
      %952 = dma.done [#allocation5], 32
    $region149: #{tpu_custom_call.1} parent=1 // pred_fallthru
      _
    %953 = vsyncpa [#allocation4], 1
    %954 = vsyncpa [#allocation8], 1
    %955 = vsyncpa [#allocation11], 1
    %956 = vsyncpa [#allocation14], 1
    %957 = vsyncpa [#allocation17], 1
    %958 = vsyncpa [#allocation20], 1
    %959 = vsyncpa [#allocation23], 1
    %960 = vsyncpa [#allocation5], 1
    %961 = vsyncpa [#allocation6], 1

// kernel: tpu_custom_call.1
$region0: #{tpu_custom_call.1}
  #allocation0 [shape = 'u32[]', space=smem, size = 0x4, offset = 0x4, fixed_abs, tag = 'smem constant byte address 0x4 - core index']
  #allocation1 [shape = 'u32[144,128]{1,0:T(1,128)}', space=vmem, size = 0x12000, scoped, tag = 'internal scratch']
  #allocation2 [shape = 'f32[2,32]{1,0:T(2,128)}', space=vmem, size = 0x400, scoped, tag = 'scratch operand']
  %s0 = inlined_call_operand.hbm [shape: bf16[2,8,32], index: 0, kind: input, shape index: {}]
  %s1 = inlined_call_operand.hbm [shape: bf16[2,8], index: 1, kind: input, shape index: {}]
  %s2 = inlined_call_operand.vmem [shape: f32[2,1], index: 2, kind: input, shape index: {}]
  %s3 = inlined_call_operand.hbm [shape: f32[2,32], index: 3, kind: input, shape index: {}]
  %s4 = inlined_call_operand.hbm [shape: f32[2,32], index: 4, kind: input, shape index: {}]
  %s5 = inlined_call_operand.hbm [shape: f32[2,32], index: 5, kind: input, shape index: {}]
  %s6 = inlined_call_operand.vmem [shape: bf16[32,32], index: 6, kind: input, shape index: {}]
  %s7 = inlined_call_operand.hbm [shape: f32[1,32], index: 7, kind: input, shape index: {}]
  %s8 = inlined_call_operand.hbm [shape: bf16[32,64], index: 8, kind: input, shape index: {}]
  %s9 = inlined_call_operand.hbm [shape: f32[1,64], index: 9, kind: input, shape index: {}]
  %s10 = inlined_call_operand.hbm [shape: bf16[32,32], index: 10, kind: input, shape index: {}]
  %s11 = inlined_call_operand.hbm [shape: f32[1,32], index: 11, kind: input, shape index: {}]
  %s12 = inlined_call_operand.vmem [shape: bf16[32,512], index: 12, kind: input, shape index: {}]
  %s13 = inlined_call_operand.vmem [shape: f32[1,512], index: 13, kind: input, shape index: {}]
  %s14 = inlined_call_operand.hbm [shape: f32[1,32], index: 14, kind: input, shape index: {}]
  %s15 = inlined_call_operand.hbm [shape: f32[1,32], index: 15, kind: input, shape index: {}]
  %s16 = inlined_call_operand.vmem [shape: f32[1,512], index: 16, kind: input, shape index: {}]
  %s17 = inlined_call_operand.vmem [shape: f32[32,4], index: 17, kind: input, shape index: {}]
  %s18 = inlined_call_operand.vmem [shape: f32[4,32], index: 18, kind: input, shape index: {}]
  %s19 = inlined_call_operand.vmem [shape: f32[3], index: 19, kind: input, shape index: {}]
  %s20 = inlined_call_operand.hbm [shape: f32[2,128], index: 20, kind: output, shape index: {}]
  %s21 = sld [smem:[#allocation0]]
  $region150: #{tpu_custom_call.1} parent=0
    _
  %s23 = ssub.s32 1, %s21
  %s24 = scalar_select 0, %s23, %s21
  $region1: #{tpu_custom_call.1} parent=0
    #allocation3 [shape = 'u8[4096]{0}', space=vmem, size = 0x1000, scoped, tag = 'input window, operand 0, single buffered']
    #allocation4 [shape = 's32[1]{0}', space=sflag, size = 0x4, scoped, tag = 'scoped memory for tpu_custom_call.1']
    #allocation5 [shape = 's32[1]{0}', space=sflag, size = 0x4, scoped, tag = 'scoped memory for tpu_custom_call.1']
    #allocation6 [shape = 's32[1]{0}', space=sflag, size = 0x4, scoped, tag = 'scoped memory for tpu_custom_call.1']
    #allocation7 [shape = 'u8[512]{0}', space=vmem, size = 0x400, scoped, tag = 'input window, operand 1, single buffered']
    #allocation8 [shape = 's32[1]{0}', space=sflag, size = 0x4, scoped, tag = 'scoped memory for tpu_custom_call.1']
    #allocation9 [shape = 'u8[1024]{0}', space=vmem, size = 0x400, scoped, tag = 'input window, operand 3, single buffered']
    #allocation10 [shape = 'u8[1024]{0}', space=vmem, size = 0x400, scoped, tag = 'input window, operand 4, single buffered']
    #allocation11 [shape = 's32[1]{0}', space=sflag, size = 0x4, scoped, tag = 'scoped memory for tpu_custom_call.1']
    #allocation12 [shape = 'u8[1024]{0}', space=vmem, size = 0x400, scoped, tag = 'input window, operand 5, single buffered']
    #allocation13 [shape = 'u8[512]{0}', space=vmem, size = 0x400, scoped, tag = 'input window, operand 7, single buffered']
    #allocation14 [shape = 's32[1]{0}', space=sflag, size = 0x4, scoped, tag = 'scoped memory for tpu_custom_call.1']
    #allocation15 [shape = 'u8[8192]{0}', space=vmem, size = 0x2000, scoped, tag = 'input window, operand 8, single buffered']
    #allocation16 [shape = 'u8[512]{0}', space=vmem, size = 0x400, scoped, tag = 'input window, operand 9, single buffered']
    #allocation17 [shape = 's32[1]{0}', space=sflag, size = 0x4, scoped, tag = 'scoped memory for tpu_custom_call.1']
    #allocation18 [shape = 'u8[8192]{0}', space=vmem, size = 0x2000, scoped, tag = 'input window, operand 10, single buffered']
    #allocation19 [shape = 'u8[512]{0}', space=vmem, size = 0x400, scoped, tag = 'input window, operand 11, single buffered']
    #allocation20 [shape = 's32[1]{0}', space=sflag, size = 0x4, scoped, tag = 'scoped memory for tpu_custom_call.1']
    #allocation21 [shape = 'u8[512]{0}', space=vmem, size = 0x400, scoped, tag = 'input window, operand 14, single buffered']
    #allocation22 [shape = 'u8[512]{0}', space=vmem, size = 0x400, scoped, tag = 'input window, operand 15, single buffered']
    #allocation23 [shape = 's32[1]{0}', space=sflag, size = 0x4, scoped, tag = 'scoped memory for tpu_custom_call.1']
    #allocation24 [shape = 'u8[512]{0}', space=smem, size = 0x200, scoped, tag = 'input window, operand 19, single buffered']
    #allocation25 [shape = 'u8[1024]{0}', space=vmem, size = 0x400, scoped, tag = 'output window, operand 0, single buffered']
    %25 = vsyncpa [#allocation4], 0
    %26 = vsyncpa [#allocation8], 0
    %27 = vsyncpa [#allocation11], 0
    %28 = vsyncpa [#allocation14], 0
    %29 = vsyncpa [#allocation17], 0
    %30 = vsyncpa [#allocation20], 0
    %31 = vsyncpa [#allocation23], 0
    %32 = vsyncpa [#allocation6], 0
    %33 = vsyncpa [#allocation5], 0
    // Predicated region
    $region2: #{tpu_custom_call.1} parent=1 // pred_check
      _
    $region3: #{tpu_custom_call.1} parent=1 // pred_check_branch
      %35 = sbr.rel (0) target = $region5
    $region4: #{tpu_custom_call.1} parent=1 // pred_region
      %s37 = ssub.s32 128, 128
      %38 = vsyncadd [#allocation4], %s37
      %s39 = sshll.u32 [#allocation3], 4
      %s40 = int_to_ptr.vmem [resolvable:$true] %s39
      %45 = dma.hbm_to_vmem [thread:$0]  %s0, 128, %s40, [#allocation4], 64, 64, 4
    $region5: #{tpu_custom_call.1} parent=1 // pred_fallthru
      _
    // Predicated region
    $region6: #{tpu_custom_call.1} parent=1 // pred_check
      _
    $region7: #{tpu_custom_call.1} parent=1 // pred_check_branch
      %47 = sbr.rel (0) target = $region9
    $region8: #{tpu_custom_call.1} parent=1 // pred_region
      %s49 = ssub.s32 16, 16
      %50 = vsyncadd [#allocation8], %s49
      %s52 = sshll.u32 [#allocation7], 4
      %s53 = int_to_ptr.vmem [resolvable:$true] %s52
      %55 = dma.hbm_to_vmem [thread:$0]  %s1, 16, %s53, [#allocation8]
    $region9: #{tpu_custom_call.1} parent=1 // pred_fallthru
      _
    // Predicated region
    $region10: #{tpu_custom_call.1} parent=1 // pred_check
      _
    $region11: #{tpu_custom_call.1} parent=1 // pred_check_branch
      %57 = sbr.rel (0) target = $region13
    $region12: #{tpu_custom_call.1} parent=1 // pred_region
      _
    $region13: #{tpu_custom_call.1} parent=1 // pred_fallthru
      _
    // Predicated region
    $region14: #{tpu_custom_call.1} parent=1 // pred_check
      _
    $region15: #{tpu_custom_call.1} parent=1 // pred_check_branch
      %59 = sbr.rel (0) target = $region17
    $region16: #{tpu_custom_call.1} parent=1 // pred_region
      %s61 = ssub.s32 32, 32
      %62 = vsyncadd [#allocation8], %s61
      %s64 = sshll.u32 [#allocation9], 4
      %s65 = int_to_ptr.vmem [resolvable:$true] %s64
      %67 = dma.hbm_to_vmem [thread:$0]  %s3, 32, %s65, [#allocation8]
    $region17: #{tpu_custom_call.1} parent=1 // pred_fallthru
      _
    // Predicated region
    $region18: #{tpu_custom_call.1} parent=1 // pred_check
      _
    $region19: #{tpu_custom_call.1} parent=1 // pred_check_branch
      %69 = sbr.rel (0) target = $region21
    $region20: #{tpu_custom_call.1} parent=1 // pred_region
      %s71 = ssub.s32 32, 32
      %72 = vsyncadd [#allocation11], %s71
      %s74 = sshll.u32 [#allocation10], 4
      %s75 = int_to_ptr.vmem [resolvable:$true] %s74
      %77 = dma.hbm_to_vmem [thread:$0]  %s4, 32, %s75, [#allocation11]
    $region21: #{tpu_custom_call.1} parent=1 // pred_fallthru
      _
    // Predicated region
    $region22: #{tpu_custom_call.1} parent=1 // pred_check
      _
    $region23: #{tpu_custom_call.1} parent=1 // pred_check_branch
      %79 = sbr.rel (0) target = $region25
    $region24: #{tpu_custom_call.1} parent=1 // pred_region
      %s81 = ssub.s32 32, 32
      %82 = vsyncadd [#allocation11], %s81
      %s84 = sshll.u32 [#allocation12], 4
      %s85 = int_to_ptr.vmem [resolvable:$true] %s84
      %87 = dma.hbm_to_vmem [thread:$0]  %s5, 32, %s85, [#allocation11]
    $region25: #{tpu_custom_call.1} parent=1 // pred_fallthru
      _
    // Predicated region
    $region26: #{tpu_custom_call.1} parent=1 // pred_check
      _
    $region27: #{tpu_custom_call.1} parent=1 // pred_check_branch
      %89 = sbr.rel (0) target = $region29
    $region28: #{tpu_custom_call.1} parent=1 // pred_region
      _
    $region29: #{tpu_custom_call.1} parent=1 // pred_fallthru
      _
    // Predicated region
    $region30: #{tpu_custom_call.1} parent=1 // pred_check
      _
    $region31: #{tpu_custom_call.1} parent=1 // pred_check_branch
      %91 = sbr.rel (0) target = $region33
    $region32: #{tpu_custom_call.1} parent=1 // pred_region
      %s93 = ssub.s32 16, 16
      %94 = vsyncadd [#allocation14], %s93
      %s96 = sshll.u32 [#allocation13], 4
      %s97 = int_to_ptr.vmem [resolvable:$true] %s96
      %99 = dma.hbm_to_vmem [thread:$0]  %s7, 16, %s97, [#allocation14]
    $region33: #{tpu_custom_call.1} parent=1 // pred_fallthru
      _
    // Predicated region
    $region34: #{tpu_custom_call.1} parent=1 // pred_check
      _
    $region35: #{tpu_custom_call.1} parent=1 // pred_check_branch
      %101 = sbr.rel (0) target = $region37
    $region36: #{tpu_custom_call.1} parent=1 // pred_region
      %s103 = ssub.s32 256, 256
      %104 = vsyncadd [#allocation14], %s103
      %s105 = sshll.u32 [#allocation15], 4
      %s106 = int_to_ptr.vmem [resolvable:$true] %s105
      %111 = dma.hbm_to_vmem [thread:$0]  %s8, 256, %s106, [#allocation14], 64, 64, 4
    $region37: #{tpu_custom_call.1} parent=1 // pred_fallthru
      _
    // Predicated region
    $region38: #{tpu_custom_call.1} parent=1 // pred_check
      _
    $region39: #{tpu_custom_call.1} parent=1 // pred_check_branch
      %113 = sbr.rel (0) target = $region41
    $region40: #{tpu_custom_call.1} parent=1 // pred_region
      %s115 = ssub.s32 16, 16
      %116 = vsyncadd [#allocation17], %s115
      %s118 = sshll.u32 [#allocation16], 4
      %s119 = int_to_ptr.vmem [resolvable:$true] %s118
      %121 = dma.hbm_to_vmem [thread:$0]  %s9, 16, %s119, [#allocation17]
    $region41: #{tpu_custom_call.1} parent=1 // pred_fallthru
      _
    // Predicated region
    $region42: #{tpu_custom_call.1} parent=1 // pred_check
      _
    $region43: #{tpu_custom_call.1} parent=1 // pred_check_branch
      %123 = sbr.rel (0) target = $region45
    $region44: #{tpu_custom_call.1} parent=1 // pred_region
      %s125 = ssub.s32 256, 256
      %126 = vsyncadd [#allocation17], %s125
      %s127 = sshll.u32 [#allocation18], 4
      %s128 = int_to_ptr.vmem [resolvable:$true] %s127
      %133 = dma.hbm_to_vmem [thread:$0]  %s10, 256, %s128, [#allocation17], 64, 64, 4
    $region45: #{tpu_custom_call.1} parent=1 // pred_fallthru
      _
    // Predicated region
    $region46: #{tpu_custom_call.1} parent=1 // pred_check
      _
    $region47: #{tpu_custom_call.1} parent=1 // pred_check_branch
      %135 = sbr.rel (0) target = $region49
    $region48: #{tpu_custom_call.1} parent=1 // pred_region
      %s137 = ssub.s32 16, 16
      %138 = vsyncadd [#allocation20], %s137
      %s140 = sshll.u32 [#allocation19], 4
      %s141 = int_to_ptr.vmem [resolvable:$true] %s140
      %143 = dma.hbm_to_vmem [thread:$0]  %s11, 16, %s141, [#allocation20]
    $region49: #{tpu_custom_call.1} parent=1 // pred_fallthru
      _
    // Predicated region
    $region50: #{tpu_custom_call.1} parent=1 // pred_check
      _
    $region51: #{tpu_custom_call.1} parent=1 // pred_check_branch
      %145 = sbr.rel (0) target = $region53
    $region52: #{tpu_custom_call.1} parent=1 // pred_region
      _
    $region53: #{tpu_custom_call.1} parent=1 // pred_fallthru
      _
    // Predicated region
    $region54: #{tpu_custom_call.1} parent=1 // pred_check
      _
    $region55: #{tpu_custom_call.1} parent=1 // pred_check_branch
      %147 = sbr.rel (0) target = $region57
    $region56: #{tpu_custom_call.1} parent=1 // pred_region
      _
    $region57: #{tpu_custom_call.1} parent=1 // pred_fallthru
      _
    // Predicated region
    $region58: #{tpu_custom_call.1} parent=1 // pred_check
      _
    $region59: #{tpu_custom_call.1} parent=1 // pred_check_branch
      %149 = sbr.rel (0) target = $region61
    $region60: #{tpu_custom_call.1} parent=1 // pred_region
      %s151 = ssub.s32 16, 16
      %152 = vsyncadd [#allocation20], %s151
      %s154 = sshll.u32 [#allocation21], 4
      %s155 = int_to_ptr.vmem [resolvable:$true] %s154
      %157 = dma.hbm_to_vmem [thread:$0]  %s14, 16, %s155, [#allocation20]
    $region61: #{tpu_custom_call.1} parent=1 // pred_fallthru
      _
    // Predicated region
    $region62: #{tpu_custom_call.1} parent=1 // pred_check
      _
    $region63: #{tpu_custom_call.1} parent=1 // pred_check_branch
      %159 = sbr.rel (0) target = $region65
    $region64: #{tpu_custom_call.1} parent=1 // pred_region
      %s161 = ssub.s32 16, 16
      %162 = vsyncadd [#allocation23], %s161
      %s164 = sshll.u32 [#allocation22], 4
      %s165 = int_to_ptr.vmem [resolvable:$true] %s164
      %167 = dma.hbm_to_vmem [thread:$0]  %s15, 16, %s165, [#allocation23]
    $region65: #{tpu_custom_call.1} parent=1 // pred_fallthru
      _
    // Predicated region
    $region66: #{tpu_custom_call.1} parent=1 // pred_check
      _
    $region67: #{tpu_custom_call.1} parent=1 // pred_check_branch
      %169 = sbr.rel (0) target = $region69
    $region68: #{tpu_custom_call.1} parent=1 // pred_region
      _
    $region69: #{tpu_custom_call.1} parent=1 // pred_fallthru
      _
    // Predicated region
    $region70: #{tpu_custom_call.1} parent=1 // pred_check
      _
    $region71: #{tpu_custom_call.1} parent=1 // pred_check_branch
      %171 = sbr.rel (0) target = $region73
    $region72: #{tpu_custom_call.1} parent=1 // pred_region
      _
    $region73: #{tpu_custom_call.1} parent=1 // pred_fallthru
      _
    // Predicated region
    $region74: #{tpu_custom_call.1} parent=1 // pred_check
      _
    $region75: #{tpu_custom_call.1} parent=1 // pred_check_branch
      %173 = sbr.rel (0) target = $region77
    $region76: #{tpu_custom_call.1} parent=1 // pred_region
      _
    $region77: #{tpu_custom_call.1} parent=1 // pred_fallthru
      _
    // Predicated region
    $region78: #{tpu_custom_call.1} parent=1 // pred_check
      _
    $region79: #{tpu_custom_call.1} parent=1 // pred_check_branch
      %175 = sbr.rel (0) target = $region81
    $region80: #{tpu_custom_call.1} parent=1 // pred_region
      %s177 = ssub.s32 16, 16
      %178 = vsyncadd [#allocation6], %s177
      %s180 = sshll.u32 %s19, 4
      %s181 = int_to_ptr.vmem [resolvable:$true] %s180
      %183 = dma.vmem_to_smem %s181, 16, [#allocation24], [#allocation6]
    $region81: #{tpu_custom_call.1} parent=1 // pred_fallthru
      _
    // Predicated region
    $region82: #{tpu_custom_call.1} parent=1 // pred_check
      _
    $region83: #{tpu_custom_call.1} parent=1 // pred_check_branch
      %185 = sbr.rel (0) target = $region85
    $region84: #{tpu_custom_call.1} parent=1 // pred_region
      %186 = dma.done [#allocation4], 128
    $region85: #{tpu_custom_call.1} parent=1 // pred_fallthru
      _
    // Predicated region
    $region86: #{tpu_custom_call.1} parent=1 // pred_check
      _
    $region87: #{tpu_custom_call.1} parent=1 // pred_check_branch
      %188 = sbr.rel (0) target = $region89
    $region88: #{tpu_custom_call.1} parent=1 // pred_region
      %189 = dma.done [#allocation8], 16
    $region89: #{tpu_custom_call.1} parent=1 // pred_fallthru
      _
    // Predicated region
    $region90: #{tpu_custom_call.1} parent=1 // pred_check
      _
    $region91: #{tpu_custom_call.1} parent=1 // pred_check_branch
      %191 = sbr.rel (0) target = $region93
    $region92: #{tpu_custom_call.1} parent=1 // pred_region
      %192 = dma.done [#allocation8], 32
    $region93: #{tpu_custom_call.1} parent=1 // pred_fallthru
      _
    // Predicated region
    $region94: #{tpu_custom_call.1} parent=1 // pred_check
      _
    $region95: #{tpu_custom_call.1} parent=1 // pred_check_branch
      %194 = sbr.rel (0) target = $region97
    $region96: #{tpu_custom_call.1} parent=1 // pred_region
      %195 = dma.done [#allocation11], 32
    $region97: #{tpu_custom_call.1} parent=1 // pred_fallthru
      _
    // Predicated region
    $region98: #{tpu_custom_call.1} parent=1 // pred_check
      _
    $region99: #{tpu_custom_call.1} parent=1 // pred_check_branch
      %197 = sbr.rel (0) target = $region101
    $region100: #{tpu_custom_call.1} parent=1 // pred_region
      %198 = dma.done [#allocation11], 32
    $region101: #{tpu_custom_call.1} parent=1 // pred_fallthru
      _
    // Predicated region
    $region102: #{tpu_custom_call.1} parent=1 // pred_check
      _
    $region103: #{tpu_custom_call.1} parent=1 // pred_check_branch
      %200 = sbr.rel (0) target = $region105
    $region104: #{tpu_custom_call.1} parent=1 // pred_region
      %201 = dma.done [#allocation14], 16
    $region105: #{tpu_custom_call.1} parent=1 // pred_fallthru
      _
    // Predicated region
    $region106: #{tpu_custom_call.1} parent=1 // pred_check
      _
    $region107: #{tpu_custom_call.1} parent=1 // pred_check_branch
      %203 = sbr.rel (0) target = $region109
    $region108: #{tpu_custom_call.1} parent=1 // pred_region
      %204 = dma.done [#allocation14], 256
    $region109: #{tpu_custom_call.1} parent=1 // pred_fallthru
      _
    // Predicated region
    $region110: #{tpu_custom_call.1} parent=1 // pred_check
      _
    $region111: #{tpu_custom_call.1} parent=1 // pred_check_branch
      %206 = sbr.rel (0) target = $region113
    $region112: #{tpu_custom_call.1} parent=1 // pred_region
      %207 = dma.done [#allocation17], 16
    $region113: #{tpu_custom_call.1} parent=1 // pred_fallthru
      _
    // Predicated region
    $region114: #{tpu_custom_call.1} parent=1 // pred_check
      _
    $region115: #{tpu_custom_call.1} parent=1 // pred_check_branch
      %209 = sbr.rel (0) target = $region117
    $region116: #{tpu_custom_call.1} parent=1 // pred_region
      %210 = dma.done [#allocation17], 256
    $region117: #{tpu_custom_call.1} parent=1 // pred_fallthru
      _
    // Predicated region
    $region118: #{tpu_custom_call.1} parent=1 // pred_check
      _
    $region119: #{tpu_custom_call.1} parent=1 // pred_check_branch
      %212 = sbr.rel (0) target = $region121
    $region120: #{tpu_custom_call.1} parent=1 // pred_region
      %213 = dma.done [#allocation20], 16
    $region121: #{tpu_custom_call.1} parent=1 // pred_fallthru
      _
    // Predicated region
    $region122: #{tpu_custom_call.1} parent=1 // pred_check
      _
    $region123: #{tpu_custom_call.1} parent=1 // pred_check_branch
      %215 = sbr.rel (0) target = $region125
    $region124: #{tpu_custom_call.1} parent=1 // pred_region
      %216 = dma.done [#allocation20], 16
    $region125: #{tpu_custom_call.1} parent=1 // pred_fallthru
      _
    // Predicated region
    $region126: #{tpu_custom_call.1} parent=1 // pred_check
      _
    $region127: #{tpu_custom_call.1} parent=1 // pred_check_branch
      %218 = sbr.rel (0) target = $region129
    $region128: #{tpu_custom_call.1} parent=1 // pred_region
      %219 = dma.done [#allocation23], 16
    $region129: #{tpu_custom_call.1} parent=1 // pred_fallthru
      _
    // Predicated region
    $region130: #{tpu_custom_call.1} parent=1 // pred_check
      _
    $region131: #{tpu_custom_call.1} parent=1 // pred_check_branch
      %221 = sbr.rel (0) target = $region133
    $region132: #{tpu_custom_call.1} parent=1 // pred_region
      %222 = dma.done [#allocation6], 16
    $region133: #{tpu_custom_call.1} parent=1 // pred_fallthru
      _
    %223 = sfence
    %p225 = scmp.eq.s32.totalorder 0, 0
    // Predicated region
    $region134: #{tpu_custom_call.1} parent=1 // pred_check
      %p226 = pneg %p225
    $region135: #{tpu_custom_call.1} parent=1 // pred_check_branch
      %228 = sbr.rel (%p226) target = $region137
    $region136: #{tpu_custom_call.1} parent=1 // pred_region
      %vm229 = vcmask 254976
      %230 = vst.msk [vmem:[#allocation2] sm:$0x3] %vm229, 0.0
    $region137: #{tpu_custom_call.1} parent=1 // pred_fallthru
      _
    %v231 = vld [vmem:[#allocation3] sm:$0xf]
    %v232 = vld [vmem:[#allocation3 + $0x4] sm:$0xf]
    %v233 = vld [vmem:[#allocation7] sm:$0x1]
    %v235 = vpack.i.b16 %v233, %v233
    %v237 = vlaneseq
    %v238 = vshrl.u32 %v237, 7
    %v239 = vsub.s32 0, %v238
    %v240 = vrot.slane %v235, %v239
    %242 = vbcast.lane.c.b16.xlu0 %v240, 256
    %v243 = vpop.permute.xlu0 %242
    %v244 = vshrl.u32 %v233, 16
    %v245 = vpack.i.b16 %v244, %v244
    %v247 = vlaneseq
    %v248 = vshrl.u32 %v247, 7
    %v249 = vsub.s32 0, %v248
    %v250 = vrot.slane %v245, %v249
    %252 = vbcast.lane.c.b16.xlu0 %v250, 256
    %v253 = vpop.permute.xlu0 %252
    %v254 = vmul.bf16 %v231, %v243
    %v255 = vmul.bf16 %v232, %v253
    %v256 = vld [vmem:[#allocation2] sm:$0x3]
    %v257 = vunpack.c.l.bf16 %v254
    %v258 = vunpack.c.l.bf16 %v255
    %vm259 = vcmask 261120
    %v260 = vsel %vm259, %v257, 0.0
    %v261 = vrot.slane %v260, 4
    %v262 = vadd.f32 %v260, %v261
    %v263 = vrot.slane %v262, 2
    %v264 = vadd.f32 %v262, %v263
    %v265 = vrot.slane %v264, 1
    %v266 = vadd.f32 %v264, %v265
    %v267 = vsel %vm259, %v258, 0.0
    %v268 = vrot.slane %v267, 4
    %v269 = vadd.f32 %v267, %v268
    %v270 = vrot.slane %v269, 2
    %v271 = vadd.f32 %v269, %v270
    %v272 = vrot.slane %v271, 1
    %v273 = vadd.f32 %v271, %v272
    %vm276 = vcmask 1041409
    %v277 = vsel %vm276, %v273, %v266
    %v279 = vadd.f32 %v256, %v277
    %vm280 = vcmask 254976
    %281 = vst.msk [vmem:[#allocation2] sm:$0x3] %vm280, %v279
    // Predicated region
    $region138: #{tpu_custom_call.1} parent=1 // pred_check
      %p282 = pneg %p225
    $region139: #{tpu_custom_call.1} parent=1 // pred_check_branch
      %284 = sbr.rel (%p282) target = $region141
    $region140: #{tpu_custom_call.1} parent=1 // pred_region
      %v285 = vld [vmem:[#allocation2] sm:$0x3]
      %v286 = vld [vmem:[%s2] sm:$0x3]
      %288 = vset.pattern.permute.xlu0 0
      %289 = vperm.xlu0 %288, %v286
      %v290 = vpop.permute.xlu0 %289
      %v292 = vmul.f32 %v285, %v290
      %v293 = vld [vmem:[#allocation9] sm:$0x3]
      %s294 = sld [smem:[#allocation24]]
      %s295 = sld [smem:[#allocation24 + $0x1]]
      %s296 = sld [smem:[#allocation24 + $0x2]]
      %v297 = vld [vmem:[#allocation21] sm:$0x1]
      %v299 = vlaneseq
      %v300 = vshrl.u32 %v299, 7
      %v301 = vsub.s32 0, %v300
      %v302 = vrot.slane %v297, %v301
      %v304 = vmul.f32 %v293, %v302
      %v305 = vsel %vm280, %v304, 0.0
      %306 = vadd.xlane.f32.xlu0 %v305
      %v307 = vpop.xlane.xlu0 %306
      %v308 = vstv %s294
      %v309 = vadd.f32 %v307, %v308
      %v310 = vld [vmem:[#allocation22] sm:$0x1]
      %v312 = vlaneseq
      %v313 = vshrl.u32 %v312, 7
      %v314 = vsub.s32 0, %v313
      %v315 = vrot.slane %v310, %v314
      %v317 = vmul.f32 %v292, %v315
      %v318 = vsel %vm280, %v317, 0.0
      %319 = vadd.xlane.f32.xlu0 %v318
      %v320 = vpop.xlane.xlu0 %319
      %v321 = vstv %s295
      %v322 = vadd.f32 %v320, %v321
      %v323 = vld [vmem:[#allocation10] sm:$0x3]
      %v324 = vld [vmem:[#allocation12] sm:$0x3]
      %v325 = vadd.f32 %v323, %v324
      %v326 = vmul.f32 %v325, 0.5
      %v327 = vpack.c.bf16 %v326, %v326
      %v328 = vld [vmem:[%s6] sm:$0xf]
      %v329 = vld [vmem:[%s6 + $0x4] sm:$0xf]
      %v330 = vld [vmem:[%s6 + $0x8] sm:$0xf]
      %v331 = vld [vmem:[%s6 + $0xc] sm:$0xf]
      %v332 = vld [vmem:[#allocation13] sm:$0x1]
      %v334 = vlaneseq
      %v335 = vshrl.u32 %v334, 7
      %v336 = vsub.s32 0, %v335
      %v337 = vrot.slane %v332, %v336
      %v343 = vunpack.c.l.b16 %v328
      %v344 = vunpack.c.l.b16 %v329
      %v345 = vunpack.c.l.b16 %v330
      %v346 = vunpack.c.l.b16 %v331
      %v347 = vpack.c.b16 %v344, %v343
      %v348 = vpack.c.b16 %v346, %v345
      %v352 = vsel %vm259, %v327, 0
      %354 = vmatprep.subr.bf16.mxu0 0
      %355 = vmatpush1.bf16.msra.mxu0 %v347
      %356 = vmatprep.subr.bf16.mxu0 0
      %357 = vmatpush1.bf16.msra.mxu0 %v348
      %358 = vmatprep.subr.bf16.mxu0 0
      %359 = vmatpush1.bf16.msra.mxu0 0
      %360 = vmatprep.subr.bf16.mxu0 0
      %361 = vmatpush1.bf16.msra.mxu0 0
      %362 = vmatprep.subr.bf16.mxu0 0
      %363 = vmatpush1.bf16.msra.mxu0 0
      %364 = vmatprep.subr.bf16.mxu0 0
      %365 = vmatpush1.bf16.msra.mxu0 0
      %366 = vmatprep.subr.bf16.mxu0 0
      %367 = vmatpush1.bf16.msra.mxu0 0
      %368 = vmatprep.subr.bf16.mxu0 0
      %369 = vmatpush1.bf16.msra.mxu0 0
      %370 = vmatprep.subr.bf16.mxu0 0
      %371 = vmatpush1.bf16.msra.mxu0 0
      %372 = vmatprep.subr.bf16.mxu0 0
      %373 = vmatpush1.bf16.msra.mxu0 0
      %374 = vmatprep.subr.bf16.mxu0 0
      %375 = vmatpush1.bf16.msra.mxu0 0
      %376 = vmatprep.subr.bf16.mxu0 0
      %377 = vmatpush1.bf16.msra.mxu0 0
      %378 = vmatprep.subr.bf16.mxu0 0
      %379 = vmatpush1.bf16.msra.mxu0 0
      %380 = vmatprep.subr.bf16.mxu0 0
      %381 = vmatpush1.bf16.msra.mxu0 0
      %382 = vmatprep.subr.bf16.mxu0 0
      %383 = vmatpush1.bf16.msra.mxu0 0
      %384 = vmatprep.subr.bf16.mxu0 0
      %385 = vmatpush1.bf16.msra.mxu0 0
      %386 = vmatprep.mubr.bf16.mxu0 0
      %387 = vmatmul.mubr.bf16.gmra.mrb[0].mxu0 %v352
      %v388 = vpop.f32.mrb[0].mxu0
      %v389 = vadd.f32 %v337, %v388
      %v390 = vpop.f32.mrb[0].mxu0
      %v391 = vpop.f32.mrb[0].mxu0
      %v392 = vpop.f32.mrb[0].mxu0
      %393 = vdwg.mxu0
      %v395 = vrot.slane %v324, 6
      %vm397 = vcmask 1041408
      %v398 = vsel %vm397, %v323, %v395
      %v399 = vpack.c.bf16 %v398, %v398
      %v400 = vld [vmem:[#allocation15] sm:$0xf]
      %v401 = vld [vmem:[#allocation15 + $0x4] sm:$0xf]
      %v402 = vld [vmem:[#allocation15 + $0x8] sm:$0xf]
      %v403 = vld [vmem:[#allocation15 + $0xc] sm:$0xf]
      %v404 = vld [vmem:[#allocation16] sm:$0x1]
      %v406 = vlaneseq
      %v407 = vshrl.u32 %v406, 7
      %v408 = vsub.s32 0, %v407
      %v409 = vrot.slane %v404, %v408
      %v415 = vunpack.c.l.b16 %v400
      %v416 = vunpack.c.l.b16 %v401
      %v417 = vunpack.c.l.b16 %v402
      %v418 = vunpack.c.l.b16 %v403
      %v419 = vpack.c.b16 %v416, %v415
      %v420 = vpack.c.b16 %v418, %v417
      %v424 = vsel %vm259, %v399, 0
      %426 = vmatprep.subr.bf16.mxu0 0
      %427 = vmatpush1.bf16.msra.mxu0 %v419
      %428 = vmatprep.subr.bf16.mxu0 0
      %429 = vmatpush1.bf16.msra.mxu0 %v420
      %430 = vmatprep.subr.bf16.mxu0 0
      %431 = vmatpush1.bf16.msra.mxu0 0
      %432 = vmatprep.subr.bf16.mxu0 0
      %433 = vmatpush1.bf16.msra.mxu0 0
      %434 = vmatprep.subr.bf16.mxu0 0
      %435 = vmatpush1.bf16.msra.mxu0 0
      %436 = vmatprep.subr.bf16.mxu0 0
      %437 = vmatpush1.bf16.msra.mxu0 0
      %438 = vmatprep.subr.bf16.mxu0 0
      %439 = vmatpush1.bf16.msra.mxu0 0
      %440 = vmatprep.subr.bf16.mxu0 0
      %441 = vmatpush1.bf16.msra.mxu0 0
      %442 = vmatprep.subr.bf16.mxu0 0
      %443 = vmatpush1.bf16.msra.mxu0 0
      %444 = vmatprep.subr.bf16.mxu0 0
      %445 = vmatpush1.bf16.msra.mxu0 0
      %446 = vmatprep.subr.bf16.mxu0 0
      %447 = vmatpush1.bf16.msra.mxu0 0
      %448 = vmatprep.subr.bf16.mxu0 0
      %449 = vmatpush1.bf16.msra.mxu0 0
      %450 = vmatprep.subr.bf16.mxu0 0
      %451 = vmatpush1.bf16.msra.mxu0 0
      %452 = vmatprep.subr.bf16.mxu0 0
      %453 = vmatpush1.bf16.msra.mxu0 0
      %454 = vmatprep.subr.bf16.mxu0 0
      %455 = vmatpush1.bf16.msra.mxu0 0
      %456 = vmatprep.subr.bf16.mxu0 0
      %457 = vmatpush1.bf16.msra.mxu0 0
      %458 = vmatprep.mubr.bf16.mxu0 0
      %459 = vmatmul.mubr.bf16.gmra.mrb[0].mxu0 %v424
      %v460 = vpop.f32.mrb[0].mxu0
      %v461 = vadd.f32 %v409, %v460
      %v462 = vpop.f32.mrb[0].mxu0
      %v463 = vpop.f32.mrb[0].mxu0
      %v464 = vpop.f32.mrb[0].mxu0
      %465 = vdwg.mxu0
      %v466 = vmul.f32 %v389, %v461
      %v468 = vrot.slane %v461, 2
      %v470 = vmul.f32 %v389, %v468
      %v472 = vrot.slane %v470, 6
      %v474 = vsel %vm397, %v466, %v472
      %v475 = vld [vmem:[%s17] sm:$0xff]
      %v476 = vld [vmem:[%s17 + $0x8] sm:$0xff]
      %v477 = vld [vmem:[%s17 + $0x10] sm:$0xff]
      %v478 = vld [vmem:[%s17 + $0x18] sm:$0xff]
      %v480 = vsel %vm259, %v474, 0
      %482 = vmatprep.subr.mxu0 0.0
      %483 = vmatpush1.msra.mxu0 %v475
      %484 = vmatprep.subr.mxu0 0.0
      %485 = vmatpush1.msra.mxu0 %v476
      %486 = vmatprep.subr.mxu0 0.0
      %487 = vmatpush1.msra.mxu0 %v477
      %488 = vmatprep.subr.mxu0 0.0
      %489 = vmatpush1.msra.mxu0 %v478
      %490 = vmatprep.subr.mxu0 0.0
      %491 = vmatpush1.msra.mxu0 0.0
      %492 = vmatprep.subr.mxu0 0.0
      %493 = vmatpush1.msra.mxu0 0.0
      %494 = vmatprep.subr.mxu0 0.0
      %495 = vmatpush1.msra.mxu0 0.0
      %496 = vmatprep.subr.mxu0 0.0
      %497 = vmatpush1.msra.mxu0 0.0
      %498 = vmatprep.subr.mxu0 0.0
      %499 = vmatpush1.msra.mxu0 0.0
      %500 = vmatprep.subr.mxu0 0.0
      %501 = vmatpush1.msra.mxu0 0.0
      %502 = vmatprep.subr.mxu0 0.0
      %503 = vmatpush1.msra.mxu0 0.0
      %504 = vmatprep.subr.mxu0 0.0
      %505 = vmatpush1.msra.mxu0 0.0
      %506 = vmatprep.subr.mxu0 0.0
      %507 = vmatpush1.msra.mxu0 0.0
      %508 = vmatprep.subr.mxu0 0.0
      %509 = vmatpush1.msra.mxu0 0.0
      %510 = vmatprep.subr.mxu0 0.0
      %511 = vmatpush1.msra.mxu0 0.0
      %512 = vmatprep.subr.mxu0 0.0
      %513 = vmatpush1.msra.mxu0 0.0
      %514 = vmatprep.subr.mxu0 0.0
      %515 = vmatpush1.msra.mxu0 0.0
      %516 = vmatprep.subr.mxu0 0.0
      %517 = vmatpush1.msra.mxu0 0.0
      %518 = vmatprep.subr.mxu0 0.0
      %519 = vmatpush1.msra.mxu0 0.0
      %520 = vmatprep.subr.mxu0 0.0
      %521 = vmatpush1.msra.mxu0 0.0
      %522 = vmatprep.subr.mxu0 0.0
      %523 = vmatpush1.msra.mxu0 0.0
      %524 = vmatprep.subr.mxu0 0.0
      %525 = vmatpush1.msra.mxu0 0.0
      %526 = vmatprep.subr.mxu0 0.0
      %527 = vmatpush1.msra.mxu0 0.0
      %528 = vmatprep.subr.mxu0 0.0
      %529 = vmatpush1.msra.mxu0 0.0
      %530 = vmatprep.subr.mxu0 0.0
      %531 = vmatpush1.msra.mxu0 0.0
      %532 = vmatprep.subr.mxu0 0.0
      %533 = vmatpush1.msra.mxu0 0.0
      %534 = vmatprep.subr.mxu0 0.0
      %535 = vmatpush1.msra.mxu0 0.0
      %536 = vmatprep.subr.mxu0 0.0
      %537 = vmatpush1.msra.mxu0 0.0
      %538 = vmatprep.subr.mxu0 0.0
      %539 = vmatpush1.msra.mxu0 0.0
      %540 = vmatprep.subr.mxu0 0.0
      %541 = vmatpush1.msra.mxu0 0.0
      %542 = vmatprep.subr.mxu0 0.0
      %543 = vmatpush1.msra.mxu0 0.0
      %544 = vmatprep.subr.mxu0 0.0
      %545 = vmatpush1.msra.mxu0 0.0
      %546 = vmatprep.mubr.f32.mxu0 0.0
      %547 = vmatmul.mubr.f32.gmra.mrb[0].mxu0 %v480
      %v548 = vpop.f32.mrb[0].mxu0
      %v549 = vadd.f32 0.0, %v548
      %v550 = vpop.f32.mrb[0].mxu0
      %551 = vdwg.mxu0
      %v552 = vmul.f32 %v549, 0.35355338
      %v554 = vrot.slane %v552, 2
      %v556 = vmax.f32 %v552, %v554
      %v557 = vsub.f32 %v552, %v556
      %v558 = vmul.f32 %v557, 1.442695
      %v559 = vpow.pop %v558
      %v561 = vrot.slane %v556, 6
      %v563 = vsub.f32 %v552, %v561
      %v564 = vmul.f32 %v563, 1.442695
      %v565 = vpow.pop %v564
      %v567 = vrot.slane %v565, 2
      %v569 = vadd.f32 %v559, %v567
      %v570 = vrcp.pop %v569
      %v571 = vmul.f32 %v559, %v570
      %v573 = vrot.slane %v570, 6
      %v575 = vmul.f32 %v565, %v573
      %v576 = vsel %vm397, %v571, %v575
      %v577 = vld [vmem:[%s18] sm:$0xf]
      %vm578 = vcmask 31744
      %v580 = vsel %vm578, %v576, 0
      %vm582 = vcmask 1043456
      %v584 = vsel %vm582, %v577, 0
      %586 = vmatprep.subr.mxu0 0.0
      %587 = vmatpush1.msra.mxu0 %v584
      %588 = vmatprep.subr.mxu0 0.0
      %589 = vmatpush1.msra.mxu0 0.0
      %590 = vmatprep.subr.mxu0 0.0
      %591 = vmatpush1.msra.mxu0 0.0
      %592 = vmatprep.subr.mxu0 0.0
      %593 = vmatpush1.msra.mxu0 0.0
      %594 = vmatprep.subr.mxu0 0.0
      %595 = vmatpush1.msra.mxu0 0.0
      %596 = vmatprep.subr.mxu0 0.0
      %597 = vmatpush1.msra.mxu0 0.0
      %598 = vmatprep.subr.mxu0 0.0
      %599 = vmatpush1.msra.mxu0 0.0
      %600 = vmatprep.subr.mxu0 0.0
      %601 = vmatpush1.msra.mxu0 0.0
      %602 = vmatprep.subr.mxu0 0.0
      %603 = vmatpush1.msra.mxu0 0.0
      %604 = vmatprep.subr.mxu0 0.0
      %605 = vmatpush1.msra.mxu0 0.0
      %606 = vmatprep.subr.mxu0 0.0
      %607 = vmatpush1.msra.mxu0 0.0
      %608 = vmatprep.subr.mxu0 0.0
      %609 = vmatpush1.msra.mxu0 0.0
      %610 = vmatprep.subr.mxu0 0.0
      %611 = vmatpush1.msra.mxu0 0.0
      %612 = vmatprep.subr.mxu0 0.0
      %613 = vmatpush1.msra.mxu0 0.0
      %614 = vmatprep.subr.mxu0 0.0
      %615 = vmatpush1.msra.mxu0 0.0
      %616 = vmatprep.subr.mxu0 0.0
      %617 = vmatpush1.msra.mxu0 0.0
      %618 = vmatprep.subr.mxu0 0.0
      %619 = vmatpush1.msra.mxu0 0.0
      %620 = vmatprep.subr.mxu0 0.0
      %621 = vmatpush1.msra.mxu0 0.0
      %622 = vmatprep.subr.mxu0 0.0
      %623 = vmatpush1.msra.mxu0 0.0
      %624 = vmatprep.subr.mxu0 0.0
      %625 = vmatpush1.msra.mxu0 0.0
      %626 = vmatprep.subr.mxu0 0.0
      %627 = vmatpush1.msra.mxu0 0.0
      %628 = vmatprep.subr.mxu0 0.0
      %629 = vmatpush1.msra.mxu0 0.0
      %630 = vmatprep.subr.mxu0 0.0
      %631 = vmatpush1.msra.mxu0 0.0
      %632 = vmatprep.subr.mxu0 0.0
      %633 = vmatpush1.msra.mxu0 0.0
      %634 = vmatprep.subr.mxu0 0.0
      %635 = vmatpush1.msra.mxu0 0.0
      %636 = vmatprep.subr.mxu0 0.0
      %637 = vmatpush1.msra.mxu0 0.0
      %638 = vmatprep.subr.mxu0 0.0
      %639 = vmatpush1.msra.mxu0 0.0
      %640 = vmatprep.subr.mxu0 0.0
      %641 = vmatpush1.msra.mxu0 0.0
      %642 = vmatprep.subr.mxu0 0.0
      %643 = vmatpush1.msra.mxu0 0.0
      %644 = vmatprep.subr.mxu0 0.0
      %645 = vmatpush1.msra.mxu0 0.0
      %646 = vmatprep.subr.mxu0 0.0
      %647 = vmatpush1.msra.mxu0 0.0
      %648 = vmatprep.subr.mxu0 0.0
      %649 = vmatpush1.msra.mxu0 0.0
      %650 = vmatprep.mubr.f32.mxu0 0.0
      %651 = vmatmul.mubr.f32.gmra.mrb[0].mxu0 %v580
      %v652 = vpop.f32.mrb[0].mxu0
      %v653 = vadd.f32 0.0, %v652
      %v654 = vpop.f32.mrb[0].mxu0
      %655 = vdwg.mxu0
      %656 = vrot.lane.b32.xlu0 %v461, 96
      %v657 = vpop.permute.xlu0 %656
      %v659 = vmul.f32 %v653, %v657
      %v661 = vrot.slane %v659, 2
      %v663 = vadd.f32 %v659, %v661
      %v664 = vpack.c.bf16 %v663, %v663
      %v665 = vld [vmem:[#allocation18] sm:$0xf]
      %v666 = vld [vmem:[#allocation18 + $0x4] sm:$0xf]
      %v667 = vld [vmem:[#allocation18 + $0x8] sm:$0xf]
      %v668 = vld [vmem:[#allocation18 + $0xc] sm:$0xf]
      %v669 = vld [vmem:[#allocation19] sm:$0x1]
      %v671 = vlaneseq
      %v672 = vshrl.u32 %v671, 7
      %v673 = vsub.s32 0, %v672
      %v674 = vrot.slane %v669, %v673
      %v680 = vunpack.c.l.b16 %v665
      %v681 = vunpack.c.l.b16 %v666
      %v682 = vunpack.c.l.b16 %v667
      %v683 = vunpack.c.l.b16 %v668
      %v684 = vpack.c.b16 %v681, %v680
      %v685 = vpack.c.b16 %v683, %v682
      %v689 = vsel %vm259, %v664, 0
      %691 = vmatprep.subr.bf16.mxu0 0
      %692 = vmatpush1.bf16.msra.mxu0 %v684
      %693 = vmatprep.subr.bf16.mxu0 0
      %694 = vmatpush1.bf16.msra.mxu0 %v685
      %695 = vmatprep.subr.bf16.mxu0 0
      %696 = vmatpush1.bf16.msra.mxu0 0
      %697 = vmatprep.subr.bf16.mxu0 0
      %698 = vmatpush1.bf16.msra.mxu0 0
      %699 = vmatprep.subr.bf16.mxu0 0
      %700 = vmatpush1.bf16.msra.mxu0 0
      %701 = vmatprep.subr.bf16.mxu0 0
      %702 = vmatpush1.bf16.msra.mxu0 0
      %703 = vmatprep.subr.bf16.mxu0 0
      %704 = vmatpush1.bf16.msra.mxu0 0
      %705 = vmatprep.subr.bf16.mxu0 0
      %706 = vmatpush1.bf16.msra.mxu0 0
      %707 = vmatprep.subr.bf16.mxu0 0
      %708 = vmatpush1.bf16.msra.mxu0 0
      %709 = vmatprep.subr.bf16.mxu0 0
      %710 = vmatpush1.bf16.msra.mxu0 0
      %711 = vmatprep.subr.bf16.mxu0 0
      %712 = vmatpush1.bf16.msra.mxu0 0
      %713 = vmatprep.subr.bf16.mxu0 0
      %714 = vmatpush1.bf16.msra.mxu0 0
      %715 = vmatprep.subr.bf16.mxu0 0
      %716 = vmatpush1.bf16.msra.mxu0 0
      %717 = vmatprep.subr.bf16.mxu0 0
      %718 = vmatpush1.bf16.msra.mxu0 0
      %719 = vmatprep.subr.bf16.mxu0 0
      %720 = vmatpush1.bf16.msra.mxu0 0
      %721 = vmatprep.subr.bf16.mxu0 0
      %722 = vmatpush1.bf16.msra.mxu0 0
      %723 = vmatprep.mubr.bf16.mxu0 0
      %724 = vmatmul.mubr.bf16.gmra.mrb[0].mxu0 %v689
      %v725 = vpop.f32.mrb[0].mxu0
      %v726 = vadd.f32 %v674, %v725
      %v727 = vpop.f32.mrb[0].mxu0
      %v728 = vpop.f32.mrb[0].mxu0
      %v729 = vpop.f32.mrb[0].mxu0
      %730 = vdwg.mxu0
      %v731 = vadd.f32 %v726, %v326
      %v732 = vpack.c.bf16 %v731, %v731
      %v733 = vld [vmem:[%s12] sm:$0xff]
      %v734 = vld [vmem:[%s12 + $0x8] sm:$0xff]
      %v735 = vld [vmem:[%s12 + $0x10] sm:$0xff]
      %v736 = vld [vmem:[%s12 + $0x18] sm:$0xff]
      %v737 = vld [vmem:[%s12 + $0x20] sm:$0xff]
      %v738 = vld [vmem:[%s12 + $0x28] sm:$0xff]
      %v739 = vld [vmem:[%s12 + $0x30] sm:$0xff]
      %v740 = vld [vmem:[%s12 + $0x38] sm:$0xff]
      %v741 = vld [vmem:[%s13] sm:$0xf]
      %v743 = vlaneseq
      %v744 = vshrl.u32 %v743, 7
      %v745 = vsub.s32 0, %v744
      %v746 = vrot.slane %v741, %v745
      %v747 = vlaneseq
      %v748 = vshrl.u32 %v747, 7
      %v749 = vsub.s32 1, %v748
      %v750 = vrot.slane %v741, %v749
      %v751 = vlaneseq
      %v752 = vshrl.u32 %v751, 7
      %v753 = vsub.s32 2, %v752
      %v754 = vrot.slane %v741, %v753
      %v755 = vlaneseq
      %v756 = vshrl.u32 %v755, 7
      %v757 = vsub.s32 3, %v756
      %v758 = vrot.slane %v741, %v757
      %v771 = vunpack.c.l.b16 %v733
      %v772 = vunpack.c.h.b16 %v733
      %v773 = vunpack.c.l.b16 %v734
      %v774 = vunpack.c.h.b16 %v734
      %v775 = vunpack.c.l.b16 %v735
      %v776 = vunpack.c.h.b16 %v735
      %v777 = vunpack.c.l.b16 %v736
      %v778 = vunpack.c.h.b16 %v736
      %v779 = vunpack.c.l.b16 %v737
      %v780 = vunpack.c.h.b16 %v737
      %v781 = vunpack.c.l.b16 %v738
      %v782 = vunpack.c.h.b16 %v738
      %v783 = vunpack.c.l.b16 %v739
      %v784 = vunpack.c.h.b16 %v739
      %v785 = vunpack.c.l.b16 %v740
      %v786 = vunpack.c.h.b16 %v740
      %v787 = vpack.c.b16 %v775, %v771
      %v788 = vpack.c.b16 %v776, %v772
      %v789 = vpack.c.b16 %v777, %v773
      %v790 = vpack.c.b16 %v778, %v774
      %v791 = vpack.c.b16 %v783, %v779
      %v792 = vpack.c.b16 %v784, %v780
      %v793 = vpack.c.b16 %v785, %v781
      %v794 = vpack.c.b16 %v786, %v782
      %v804 = vsel %vm259, %v732, 0
      %806 = vmatprep.subr.bf16.mxu0 %v788
      %807 = vmatpush1.bf16.msra.mxu0 %v787
      %808 = vmatprep.subr.bf16.mxu0 %v792
      %809 = vmatpush1.bf16.msra.mxu0 %v791
      %810 = vmatprep.subr.bf16.mxu0 0
      %811 = vmatpush1.bf16.msra.mxu0 0
      %812 = vmatprep.subr.bf16.mxu0 0
      %813 = vmatpush1.bf16.msra.mxu0 0
      %814 = vmatprep.subr.bf16.mxu0 0
      %815 = vmatpush1.bf16.msra.mxu0 0
      %816 = vmatprep.subr.bf16.mxu0 0
      %817 = vmatpush1.bf16.msra.mxu0 0
      %818 = vmatprep.subr.bf16.mxu0 0
      %819 = vmatpush1.bf16.msra.mxu0 0
      %820 = vmatprep.subr.bf16.mxu0 0
      %821 = vmatpush1.bf16.msra.mxu0 0
      %822 = vmatprep.subr.bf16.mxu0 0
      %823 = vmatpush1.bf16.msra.mxu0 0
      %824 = vmatprep.subr.bf16.mxu0 0
      %825 = vmatpush1.bf16.msra.mxu0 0
      %826 = vmatprep.subr.bf16.mxu0 0
      %827 = vmatpush1.bf16.msra.mxu0 0
      %828 = vmatprep.subr.bf16.mxu0 0
      %829 = vmatpush1.bf16.msra.mxu0 0
      %830 = vmatprep.subr.bf16.mxu0 0
      %831 = vmatpush1.bf16.msra.mxu0 0
      %832 = vmatprep.subr.bf16.mxu0 0
      %833 = vmatpush1.bf16.msra.mxu0 0
      %834 = vmatprep.subr.bf16.mxu0 0
      %835 = vmatpush1.bf16.msra.mxu0 0
      %836 = vmatprep.subr.bf16.mxu0 0
      %837 = vmatpush1.bf16.msra.mxu0 0
      %838 = vmatprep.mubr.bf16.mxu0 0
      %839 = vmatmul.mubr.bf16.gmra.mrb[0].mxu0 %v804
      %v840 = vpop.f32.mrb[0].mxu0
      %v841 = vadd.f32 %v746, %v840
      %v842 = vpop.f32.mrb[0].mxu0
      %v843 = vadd.f32 %v750, %v842
      %v844 = vpop.f32.mrb[0].mxu0
      %v845 = vpop.f32.mrb[0].mxu0
      %846 = vdwg.mxu0
      %847 = vmatprep.subr.bf16.mxu0 %v790
      %848 = vmatpush1.bf16.msra.mxu0 %v789
      %849 = vmatprep.subr.bf16.mxu0 %v794
      %850 = vmatpush1.bf16.msra.mxu0 %v793
      %851 = vmatprep.subr.bf16.mxu0 0
      %852 = vmatpush1.bf16.msra.mxu0 0
      %853 = vmatprep.subr.bf16.mxu0 0
      %854 = vmatpush1.bf16.msra.mxu0 0
      %855 = vmatprep.subr.bf16.mxu0 0
      %856 = vmatpush1.bf16.msra.mxu0 0
      %857 = vmatprep.subr.bf16.mxu0 0
      %858 = vmatpush1.bf16.msra.mxu0 0
      %859 = vmatprep.subr.bf16.mxu0 0
      %860 = vmatpush1.bf16.msra.mxu0 0
      %861 = vmatprep.subr.bf16.mxu0 0
      %862 = vmatpush1.bf16.msra.mxu0 0
      %863 = vmatprep.subr.bf16.mxu0 0
      %864 = vmatpush1.bf16.msra.mxu0 0
      %865 = vmatprep.subr.bf16.mxu0 0
      %866 = vmatpush1.bf16.msra.mxu0 0
      %867 = vmatprep.subr.bf16.mxu0 0
      %868 = vmatpush1.bf16.msra.mxu0 0
      %869 = vmatprep.subr.bf16.mxu0 0
      %870 = vmatpush1.bf16.msra.mxu0 0
      %871 = vmatprep.subr.bf16.mxu0 0
      %872 = vmatpush1.bf16.msra.mxu0 0
      %873 = vmatprep.subr.bf16.mxu0 0
      %874 = vmatpush1.bf16.msra.mxu0 0
      %875 = vmatprep.subr.bf16.mxu0 0
      %876 = vmatpush1.bf16.msra.mxu0 0
      %877 = vmatprep.subr.bf16.mxu0 0
      %878 = vmatpush1.bf16.msra.mxu0 0
      %879 = vmatprep.mubr.bf16.mxu0 0
      %880 = vmatmul.mubr.bf16.gmra.mrb[0].mxu0 %v804
      %v881 = vpop.f32.mrb[0].mxu0
      %v882 = vadd.f32 %v754, %v881
      %v883 = vpop.f32.mrb[0].mxu0
      %v884 = vadd.f32 %v758, %v883
      %v885 = vpop.f32.mrb[0].mxu0
      %v886 = vpop.f32.mrb[0].mxu0
      %887 = vdwg.mxu0
      %v888 = vmax.f32 %v841, 0.0
      %v889 = vmax.f32 %v843, 0.0
      %v890 = vmax.f32 %v882, 0.0
      %v891 = vmax.f32 %v884, 0.0
      %v892 = vld [vmem:[%s16] sm:$0xf]
      %v894 = vlaneseq
      %v895 = vshrl.u32 %v894, 7
      %v896 = vsub.s32 0, %v895
      %v897 = vrot.slane %v892, %v896
      %v898 = vlaneseq
      %v899 = vshrl.u32 %v898, 7
      %v900 = vsub.s32 1, %v899
      %v901 = vrot.slane %v892, %v900
      %v902 = vlaneseq
      %v903 = vshrl.u32 %v902, 7
      %v904 = vsub.s32 2, %v903
      %v905 = vrot.slane %v892, %v904
      %v906 = vlaneseq
      %v907 = vshrl.u32 %v906, 7
      %v908 = vsub.s32 3, %v907
      %v909 = vrot.slane %v892, %v908
      %v914 = vmul.f32 %v888, %v897
      %v915 = vmul.f32 %v889, %v901
      %v916 = vmul.f32 %v890, %v905
      %v917 = vmul.f32 %v891, %v909
      %v918 = vsel %vm397, %v914, 0.0
      %v919 = vsel %vm397, %v915, 0.0
      %v920 = vadd.f32 %v918, %v919
      %v921 = vsel %vm397, %v916, 0.0
      %v922 = vadd.f32 %v920, %v921
      %v923 = vsel %vm397, %v917, 0.0
      %v924 = vadd.f32 %v922, %v923
      %925 = vadd.xlane.f32.xlu0 %v924
      %v926 = vpop.xlane.xlu0 %925
      %v927 = vstv %s296
      %v928 = vadd.f32 %v926, %v927
      %v929 = vlaneseq
      %v930 = vand.u32 %v929, 127
      %vm931 = vcmp.eq.s32.totalorder %v930, 0
      %v932 = vsel %vm931, %v309, 0.0
      %vm933 = vcmp.eq.s32.totalorder %v930, 1
      %v934 = vsel %vm933, %v322, 0.0
      %v935 = vadd.f32 %v932, %v934
      %vm936 = vcmp.eq.s32.totalorder %v930, 2
      %v937 = vsel %vm936, %v928, 0.0
      %v938 = vadd.f32 %v935, %v937
      %939 = vst [vmem:[#allocation25] sm:$0x3] %v938
    $region141: #{tpu_custom_call.1} parent=1 // pred_fallthru
      _
    // Predicated region
    $region142: #{tpu_custom_call.1} parent=1 // pred_check
      _
    $region143: #{tpu_custom_call.1} parent=1 // pred_check_branch
      %941 = sbr.rel (0) target = $region145
    $region144: #{tpu_custom_call.1} parent=1 // pred_region
      %s943 = ssub.s32 32, 32
      %944 = vsyncadd [#allocation5], %s943
      %s946 = sshll.u32 [#allocation25], 4
      %s947 = int_to_ptr.vmem [resolvable:$true] %s946
      %949 = dma.vmem_to_hbm [thread:$0]  %s947, 32, %s20, [#allocation5]
    $region145: #{tpu_custom_call.1} parent=1 // pred_fallthru
      _
    // Predicated region
    $region146: #{tpu_custom_call.1} parent=1 // pred_check
      _
    $region147: #{tpu_custom_call.1} parent=1 // pred_check_branch
      %951 = sbr.rel (0) target = $region149
    $region148: #{tpu_custom_call.1} parent=1 // pred_region
      %952 = dma.done [#allocation5], 32
    $region149: #{tpu_custom_call.1} parent=1 // pred_fallthru
      _
    %953 = vsyncpa [#allocation4], 1
    %954 = vsyncpa [#allocation8], 1
    %955 = vsyncpa [#allocation11], 1
    %956 = vsyncpa [#allocation14], 1
    %957 = vsyncpa [#allocation17], 1
    %958 = vsyncpa [#allocation20], 1
    %959 = vsyncpa [#allocation23], 1
    %960 = vsyncpa [#allocation5], 1
    %961 = vsyncpa [#allocation6], 1

</llo_original>
